<compile_context>
chip_gen: v5e
topology: v5e:2x2
jax: 0.10.0
libtpu: 0.0.40
codegen_flags: <defaults>
</compile_context>

<pallas_src>
import jax
import jax.numpy as jnp
import numpy as np
from jax import lax
from jax.experimental import pallas as pl
from jax.experimental.pallas import tpu as pltpu

N_WAY = 10       # number of prototypes
FEAT_DIM = 512   # backbone feature dim (ResidualAdapter dim=512)
ADAPT_HDIM = 64  # ResidualAdapter hidden dim
M_PAD = 128      # prototypes padded to a lane-dense 128-wide score block


def _round_up(a, b):
    return pl.cdiv(a, b) * b


def proto_scores_kernel(x_ref, wb_ref, bb_ref, pn_ref, pp_ref, out_ref, acc_ref):
    """Grid = (n_tiles, k_tiles).  acc_ref accumulates feat = x @ wb over K."""
    k = pl.program_id(1)

    @pl.when(k == 0)
    def _init():
        acc_ref[...] = jnp.zeros_like(acc_ref)

    # bf16 x bf16 -> f32 accumulate on the MXU.
    acc_ref[...] += jnp.dot(x_ref[...], wb_ref[...],
                            preferred_element_type=jnp.float32)

    @pl.when(k == pl.num_programs(1) - 1)
    def _finalize():
        feat = acc_ref[...] + bb_ref[...]                              # [TN, F]

        # z = F.normalize(feat)  (p=2, dim=1, eps=1e-12)
        norm = jnp.sqrt(jnp.sum(feat * feat, axis=-1, keepdims=True))
        z = feat / jnp.maximum(norm, 1e-12)                            # [TN, F]

        # z . p^T without an explicit transpose: contract both last axes.
        cross = lax.dot_general(
            z, pn_ref[...],
            dimension_numbers=(((1,), (1,)), ((), ())),
            preferred_element_type=jnp.float32)                        # [TN, M_PAD]

        # dists = ||z||^2 + ||p||^2 - 2 z.p, with ||z||^2 == 1.
        # forward returns -dists.
        out_ref[...] = 2.0 * cross - pp_ref[...] - 1.0


def prototypical_forward(images, wb, bb, proto, wd, bd, wu, bu,
                         *, tk=512, tn_max=128):
    """images: [N, C, H, W] float32 -> scores [N, N_WAY] float32."""
    n = images.shape[0]
    x = images.reshape(n, -1).astype(jnp.float32)                      # [N, K]
    in_dim = x.shape[1]
    n_way, feat_dim = proto.shape

    # ---- Prototype-only work (ResidualAdapter + ||p||^2), hoisted out of the
    # per-image kernel: p_new = p + up(relu(down(p))). ----
    p_new = proto + jnp.maximum(proto @ wd + bd, 0.0) @ wu + bu        # [M, F]
    pp = jnp.sum(p_new * p_new, axis=-1)                               # [M]

    # Pad prototypes to a lane-dense 128-wide score block.
    m_pad = max(M_PAD, int(_round_up(n_way, 128)))
    p_new_p = jnp.zeros((m_pad, feat_dim), jnp.float32).at[:n_way].set(p_new)
    pp_p = jnp.zeros((1, m_pad), jnp.float32).at[0, :n_way].set(pp)

    # ---- Tile sizes / padding. K tile multiple of 128; row tile multiple of 8.
    tk = int(min(tk, _round_up(in_dim, 128)))
    k_pad = int(_round_up(in_dim, tk))
    n8 = int(_round_up(n, 8))
    tn = int(min(tn_max, n8))
    n_pad = int(_round_up(n8, tn))

    # Backbone matmul operands in bf16 (f32 accumulation inside the kernel).
    x_p = jnp.zeros((n_pad, k_pad), jnp.bfloat16).at[:n, :in_dim].set(
        x.astype(jnp.bfloat16))
    wb_p = jnp.zeros((k_pad, feat_dim), jnp.bfloat16).at[:in_dim].set(
        wb.astype(jnp.bfloat16))
    bb_p = bb.reshape(1, feat_dim).astype(jnp.float32)

    grid = (n_pad // tn, k_pad // tk)

    scores = pl.pallas_call(
        proto_scores_kernel,
        out_shape=jax.ShapeDtypeStruct((n_pad, m_pad), jnp.float32),
        grid=grid,
        in_specs=[
            pl.BlockSpec((tn, tk), lambda i, k: (i, k)),          # x (bf16)
            pl.BlockSpec((tk, feat_dim), lambda i, k: (k, 0)),    # wb (bf16)
            pl.BlockSpec((1, feat_dim), lambda i, k: (0, 0)),     # bb
            pl.BlockSpec((m_pad, feat_dim), lambda i, k: (0, 0)), # p_new (padded)
            pl.BlockSpec((1, m_pad), lambda i, k: (0, 0)),        # ||p||^2 (padded)
        ],
        out_specs=pl.BlockSpec((tn, m_pad), lambda i, k: (i, 0)),
        scratch_shapes=[pltpu.VMEM((tn, feat_dim), jnp.float32)],  # feat accumulator
        compiler_params=pltpu.CompilerParams(
            # Row axis parallel (v7x megacore), contraction axis arbitrary.
            dimension_semantics=("parallel", "arbitrary"),
            # Explicit budget: safe on v5e/v6e (128 MiB) and v7x (64 MiB);
            # double-buffered tiles here use well under 2 MiB.
            vmem_limit_bytes=32 * 1024 * 1024),
    )(x_p, wb_p, bb_p, p_new_p, pp_p)

    return scores[:n, :n_way]


def reference_forward(images, wb, bb, proto, wd, bd, wu, bu):
    """Pure-JAX reference. The backbone matmul operands are quantized to bf16
    exactly as the kernel stores them (f32 accumulation), so the comparison
    isolates Pallas correctness; everything else is f32."""
    n = images.shape[0]
    x = images.reshape(n, -1).astype(jnp.float32)
    feat = jnp.dot(x.astype(jnp.bfloat16), wb.astype(jnp.bfloat16),
                   preferred_element_type=jnp.float32) + bb
    p_new = proto + jnp.maximum(proto @ wd + bd, 0.0) @ wu + bu
    z = feat / jnp.maximum(
        jnp.sqrt(jnp.sum(feat * feat, axis=-1, keepdims=True)), 1e-12)
    diff = z[:, None, :] - p_new[None, :, :]
    return -jnp.sum(diff * diff, axis=-1)


if __name__ == "__main__":
    key = jax.random.PRNGKey(0)
    k_img, k_wb, k_bb, k_proto, k_wd, k_bd = jax.random.split(key, 6)

    # Small image input: batch=8, channels=4, spatial=16x16 (NCHW).
    N, C, H, W = 8, 4, 16, 16
    images = jax.random.normal(k_img, (N, C, H, W), dtype=jnp.float32)

    in_dim = C * H * W  # 1024

    # Deterministic synthetic parameters (stand-in backbone + prototypes).
    wb = jax.random.normal(k_wb, (in_dim, FEAT_DIM), dtype=jnp.float32) * 0.02
    bb = jax.random.normal(k_bb, (1, FEAT_DIM), dtype=jnp.float32) * 0.01
    proto = jax.random.normal(k_proto, (N_WAY, FEAT_DIM), dtype=jnp.float32)
    proto = proto / jnp.linalg.norm(proto, axis=-1, keepdims=True)

    # ResidualAdapter params (up weight/bias zero-initialized, as in the module).
    wd = jax.random.normal(k_wd, (FEAT_DIM, ADAPT_HDIM), dtype=jnp.float32) * 0.05
    bd = jax.random.normal(k_bd, (1, ADAPT_HDIM), dtype=jnp.float32) * 0.01
    wu = jnp.zeros((ADAPT_HDIM, FEAT_DIM), dtype=jnp.float32)
    bu = jnp.zeros((1, FEAT_DIM), dtype=jnp.float32)

    out = prototypical_forward(images, wb, bb, proto, wd, bd, wu, bu)
    out = jax.block_until_ready(out)

    ref = reference_forward(images, wb, bb, proto, wd, bd, wu, bu)
    np.testing.assert_allclose(np.asarray(out), np.asarray(ref),
                               rtol=2e-3, atol=2e-3)

    print("KERNEL_OK")
</pallas_src>

<mosaic_0001>
module attributes {stable_mosaic.version = 11 : i64} {
  func.func @proto_scores_kernel(%arg0: i32, %arg1: i32, %arg2: memref<8x512xbf16, #tpu.memory_space<vmem>>, %arg3: memref<512x512xbf16, #tpu.memory_space<vmem>>, %arg4: memref<1x512xf32, #tpu.memory_space<vmem>>, %arg5: memref<128x512xf32, #tpu.memory_space<vmem>>, %arg6: memref<1x128xf32, #tpu.memory_space<vmem>>, %arg7: memref<8x128xf32, #tpu.memory_space<vmem>>, %arg8: memref<8x512xf32, #tpu.memory_space<vmem>>) attributes {dimension_semantics = [#tpu.dimension_semantics<parallel>, #tpu.dimension_semantics<arbitrary>], iteration_bounds = array<i64: 1, 2>, scalar_prefetch = 0 : i64, scratch_operands = 1 : i64, tpu.core_type = #tpu.core_type<tc>, window_params = [{transform_indices = @transform_0, window_bounds = array<i64: 8, 512>}, {transform_indices = @transform_1, window_bounds = array<i64: 512, 512>}, {pipeline_mode = #tpu.pipeline_mode<synchronous>, transform_indices = @transform_2, window_bounds = array<i64: 1, 512>}, {pipeline_mode = #tpu.pipeline_mode<synchronous>, transform_indices = @transform_3, window_bounds = array<i64: 128, 512>}, {pipeline_mode = #tpu.pipeline_mode<synchronous>, transform_indices = @transform_4, window_bounds = array<i64: 1, 128>}, {transform_indices = @transform_5, window_bounds = array<i64: 8, 128>}]} {
    %c0_i32 = arith.constant 0 : i32
    %0 = arith.cmpi eq, %arg1, %c0_i32 : i32
    %1 = arith.extui %0 : i1 to i32
    %c0_i32_0 = arith.constant 0 : i32
    %2 = arith.cmpi ne, %1, %c0_i32_0 : i32
    scf.if %2 {
      %cst_9 = arith.constant 0.000000e+00 : f32
      %12 = vector.broadcast %cst_9 : f32 to vector<8x512xf32>
      %c0_10 = arith.constant 0 : index
      %c0_11 = arith.constant 0 : index
      %13 = vector.load %arg8[%c0_10, %c0_11] : memref<8x512xf32, #tpu.memory_space<vmem>>, vector<8x512xf32>
      tpu.vector_store %arg8[%c0_10, %c0_11], %12 {strides = array<i32>} : memref<8x512xf32, #tpu.memory_space<vmem>>, vector<8x512xf32>,
    } else {
    }
    %c0 = arith.constant 0 : index
    %c0_1 = arith.constant 0 : index
    %3 = vector.load %arg8[%c0, %c0_1] : memref<8x512xf32, #tpu.memory_space<vmem>>, vector<8x512xf32>
    %c0_2 = arith.constant 0 : index
    %c0_3 = arith.constant 0 : index
    %4 = vector.load %arg2[%c0_2, %c0_3] : memref<8x512xbf16, #tpu.memory_space<vmem>>, vector<8x512xbf16>
    %c0_4 = arith.constant 0 : index
    %c0_5 = arith.constant 0 : index
    %5 = vector.load %arg3[%c0_4, %c0_5] : memref<512x512xbf16, #tpu.memory_space<vmem>>, vector<512x512xbf16>
    %cst = arith.constant dense<0.000000e+00> : vector<8x512xf32>
    %6 = tpu.matmul %4, %5, %cst {dimension_numbers = #tpu.dot_dimension_numbers<[1], [0], [0], [1], [0, 0, 1, 1], [], []>} : vector<8x512xbf16>, vector<512x512xbf16>, vector<8x512xf32> -> vector<8x512xf32>
    %7 = arith.addf %3, %6 : vector<8x512xf32>
    %c0_6 = arith.constant 0 : index
    %c0_7 = arith.constant 0 : index
    %8 = vector.load %arg8[%c0_6, %c0_7] : memref<8x512xf32, #tpu.memory_space<vmem>>, vector<8x512xf32>
    tpu.vector_store %arg8[%c0_6, %c0_7], %7 {strides = array<i32>} : memref<8x512xf32, #tpu.memory_space<vmem>>, vector<8x512xf32>,
    %c1_i32 = arith.constant 1 : i32
    %9 = arith.cmpi eq, %arg1, %c1_i32 : i32
    %10 = arith.extui %9 : i1 to i32
    %c0_i32_8 = arith.constant 0 : i32
    %11 = arith.cmpi ne, %10, %c0_i32_8 : i32
    scf.if %11 {
      %c0_9 = arith.constant 0 : index
      %c0_10 = arith.constant 0 : index
      %12 = vector.load %arg8[%c0_9, %c0_10] : memref<8x512xf32, #tpu.memory_space<vmem>>, vector<8x512xf32>
      %c0_11 = arith.constant 0 : index
      %c0_12 = arith.constant 0 : index
      %13 = vector.load %arg4[%c0_11, %c0_12] : memref<1x512xf32, #tpu.memory_space<vmem>>, vector<1x512xf32>
      %14 = vector.broadcast %13 : vector<1x512xf32> to vector<8x512xf32>
      %15 = arith.addf %12, %14 : vector<8x512xf32>
      %16 = arith.mulf %15, %15 : vector<8x512xf32>
      %cst_13 = arith.constant dense<0.000000e+00> : vector<8xf32>
      %17 = vector.multi_reduction <add>, %16, %cst_13 [1] : vector<8x512xf32> to vector<8xf32>
      %18 = vector.shape_cast %17 : vector<8xf32> to vector<8x1xf32>
      %19 = math.sqrt %18 : vector<8x1xf32>
      %cst_14 = arith.constant 9.99999996E-13 : f32
      %20 = vector.broadcast %cst_14 : f32 to vector<8x1xf32>
      %21 = arith.maximumf %19, %20 : vector<8x1xf32>
      %22 = vector.broadcast %21 : vector<8x1xf32> to vector<8x512xf32>
      %23 = arith.divf %15, %22 : vector<8x512xf32>
      %c0_15 = arith.constant 0 : index
      %c0_16 = arith.constant 0 : index
      %24 = vector.load %arg5[%c0_15, %c0_16] : memref<128x512xf32, #tpu.memory_space<vmem>>, vector<128x512xf32>
      %cst_17 = arith.constant dense<0.000000e+00> : vector<8x128xf32>
      %25 = tpu.matmul %23, %24, %cst_17 {dimension_numbers = #tpu.dot_dimension_numbers<[1], [1], [0], [0], [0, 0, 1, 0], [], []>} : vector<8x512xf32>, vector<128x512xf32>, vector<8x128xf32> -> vector<8x128xf32>
      %cst_18 = arith.constant 2.000000e+00 : f32
      %26 = vector.broadcast %cst_18 : f32 to vector<8x128xf32>
      %27 = arith.mulf %26, %25 : vector<8x128xf32>
      %c0_19 = arith.constant 0 : index
      %c0_20 = arith.constant 0 : index
      %28 = vector.load %arg6[%c0_19, %c0_20] : memref<1x128xf32, #tpu.memory_space<vmem>>, vector<1x128xf32>
      %29 = vector.broadcast %28 : vector<1x128xf32> to vector<8x128xf32>
      %30 = arith.subf %27, %29 : vector<8x128xf32>
      %cst_21 = arith.constant 1.000000e+00 : f32
      %31 = vector.broadcast %cst_21 : f32 to vector<8x128xf32>
      %32 = arith.subf %30, %31 : vector<8x128xf32>
      %c0_22 = arith.constant 0 : index
      %c0_23 = arith.constant 0 : index
      %33 = vector.load %arg7[%c0_22, %c0_23] : memref<8x128xf32, #tpu.memory_space<vmem>>, vector<8x128xf32>
      tpu.vector_store %arg7[%c0_22, %c0_23], %32 {strides = array<i32>} : memref<8x128xf32, #tpu.memory_space<vmem>>, vector<8x128xf32>,
    } else {
    }
    return
  }
  func.func @transform_0(%arg0: i32, %arg1: i32) -> (i32, i32) {
    %c0_i32 = arith.constant 0 : i32
    return %arg0, %arg1 : i32, i32
  }
  func.func @transform_1(%arg0: i32, %arg1: i32) -> (i32, i32) {
    %c0_i32 = arith.constant 0 : i32
    %c0_i32_0 = arith.constant 0 : i32
    return %arg1, %c0_i32 : i32, i32
  }
  func.func @transform_2(%arg0: i32, %arg1: i32) -> (i32, i32) {
    %c0_i32 = arith.constant 0 : i32
    %c0_i32_0 = arith.constant 0 : i32
    %c0_i32_1 = arith.constant 0 : i32
    return %c0_i32, %c0_i32_0 : i32, i32
  }
  func.func @transform_3(%arg0: i32, %arg1: i32) -> (i32, i32) {
    %c0_i32 = arith.constant 0 : i32
    %c0_i32_0 = arith.constant 0 : i32
    %c0_i32_1 = arith.constant 0 : i32
    return %c0_i32, %c0_i32_0 : i32, i32
  }
  func.func @transform_4(%arg0: i32, %arg1: i32) -> (i32, i32) {
    %c0_i32 = arith.constant 0 : i32
    %c0_i32_0 = arith.constant 0 : i32
    %c0_i32_1 = arith.constant 0 : i32
    return %c0_i32, %c0_i32_0 : i32, i32
  }
  func.func @transform_5(%arg0: i32, %arg1: i32) -> (i32, i32) {
    %c0_i32 = arith.constant 0 : i32
    %c0_i32_0 = arith.constant 0 : i32
    return %arg0, %c0_i32 : i32, i32
  }
}

</mosaic_0001>

<llo_original>
// kernel: tpu_custom_call.1
$region0: #{tpu_custom_call.1}
  #allocation0 [shape = 'u32[]', space=smem, size = 0x4, offset = 0x4, fixed_abs, tag = 'smem constant byte address 0x4 - core index']
  #allocation1 [shape = 'u32[72,128]{1,0:T(1,128)}', space=vmem, size = 0x9000, scoped, tag = 'internal scratch']
  #allocation2 [shape = 'f32[8,512]{1,0:T(8,128)}', space=vmem, size = 0x4000, scoped, tag = 'scratch operand']
  %s0 = inlined_call_operand.hbm [shape: bf16[8,1024], index: 0, kind: input, shape index: {}]
  %s1 = inlined_call_operand.hbm [shape: bf16[1024,512], index: 1, kind: input, shape index: {}]
  %s2 = inlined_call_operand.hbm [shape: f32[1,512], index: 2, kind: input, shape index: {}]
  %s3 = inlined_call_operand.hbm [shape: f32[128,512], index: 3, kind: input, shape index: {}]
  %s4 = inlined_call_operand.vmem [shape: f32[1,128], index: 4, kind: input, shape index: {}]
  %s5 = inlined_call_operand.hbm [shape: f32[8,128], index: 5, kind: output, shape index: {}]
  %s6 = sld [smem:[#allocation0]]
  $region77: #{tpu_custom_call.1} parent=0
    _
  %s8 = ssub.s32 1, %s6
  %s9 = scalar_select 0, %s8, %s6
  $region1: #{tpu_custom_call.1} parent=0
    #allocation3 [shape = 'u8[16384]{0}', space=vmem, size = 0x4000, scoped, tag = 'input window, operand 0']
    #allocation4 [shape = 's32[2]{0}', space=sflag, size = 0x8, scoped, tag = 'scoped memory for tpu_custom_call.1']
    #allocation5 [shape = 's32[2]{0}', space=sflag, size = 0x8, scoped, tag = 'scoped memory for tpu_custom_call.1']
    #allocation6 [shape = 'u8[1048576]{0}', space=vmem, size = 0x100000, scoped, tag = 'input window, operand 1']
    #allocation7 [shape = 's32[2]{0}', space=sflag, size = 0x8, scoped, tag = 'scoped memory for tpu_custom_call.1']
    #allocation8 [shape = 'u8[2048]{0}', space=vmem, size = 0x800, scoped, tag = 'input window, operand 2, single buffered']
    #allocation9 [shape = 'u8[262144]{0}', space=vmem, size = 0x40000, scoped, tag = 'input window, operand 3, single buffered']
    #allocation10 [shape = 's32[1]{0}', space=sflag, size = 0x4, scoped, tag = 'scoped memory for tpu_custom_call.1']
    #allocation11 [shape = 'u8[4096]{0}', space=vmem, size = 0x1000, scoped, tag = 'output window, operand 0, single buffered']
    %10 = vsyncpa [#allocation4], 0
    %s11 = scalar_lea.sflag [#allocation4], 1
    %12 = vsyncpa %s11, 0
    %13 = vsyncpa [#allocation7], 0
    %s14 = scalar_lea.sflag [#allocation7], 1
    %15 = vsyncpa %s14, 0
    %16 = vsyncpa [#allocation10], 0
    %17 = vsyncpa [#allocation5], 0
    loop: start=0, step=1, limit=4
    $region2: #{tpu_custom_call.1} parent=1 // loop_pre_header
      _
    $region3: #{tpu_custom_call.1} parent=1 // loop_header
      %s19 = sphi 0, %s23
      %p20 = scmp.ge.s32.totalorder %s19, 4
      %s26 = sphi 0, %s38
      %s27 = sphi 0, %s34
      %s28 = sphi 0, %s26
      %s29 = sphi 0, %s27
      %s30 = sphi 0, %s28
      %s31 = sphi 0, %s29
      %s43 = sphi 0, %s45
      %s46 = sphi 0, %s43
      %s47 = sphi 0, %s46
      %s63 = sphi 0, %s47
      %s69 = sphi 0, %s71
      %s72 = sphi 0, %s69
      %s73 = sphi 0, %s72
      %s89 = sphi 0, %s73
      %s93 = sphi 0, %s93
      %s95 = sphi 0, %s93
      %s96 = sphi 0, %s95
      %s110 = sphi 0, %s96
      %s114 = sphi 0, %s114
      %s116 = sphi 0, %s114
      %s117 = sphi 0, %s116
      %s131 = sphi 0, %s117
      %s135 = sphi 0, %s135
      %s137 = sphi 0, %s135
      %s138 = sphi 0, %s137
      %s152 = sphi 0, %s138
      %s158 = sphi 0, %s160
      %s161 = sphi 0, %s158
      %s162 = sphi 0, %s161
      %s178 = sphi 0, %s162
    $region4: #{tpu_custom_call.1} parent=1 // loop_header_branch
      %22 = sbr.rel (%p20) target = $region8
    $region5: #{tpu_custom_call.1} parent=1 // loop_body
      %s24 = ssub.s32 %s19, 1
      %s25 = ssub.s32 %s19, 2
      %s32 = sadd.s32 1, %s27
      %p33 = scmp.ge.s32.totalorder %s32, 2
      %s34 = scalar_select %p33, 0, %s32
      %s35 = sadd.s32 1, %s26
      %s36 = scalar_select %p33, %s35, %s26
      %p37 = scmp.ge.s32.totalorder %s36, 1
      %s38 = scalar_select %p37, 0, %s36
      %s39 = ssub.s32 %s26, %s38
      %s40 = ssub.s32 %s27, %s34
      %s41 = sor.u32 %s39, %s40
      %p42 = scmp.eq.s32.totalorder %s41, 0
      %s44 = sadd.s32 %s43, 1
      %s45 = scalar_select %p42, %s43, %s44
      %p48 = pneg %p42
      %p49 = scmp.eq.s32.totalorder %s19, 1
      %p50 = por %p48, %p49
      %p51 = scmp.ne.s32.totalorder %s43, %s46
      %p52 = scmp.eq.s32.totalorder %s19, 0
      %p53 = por %p51, %p52
      %p54 = scmp.ne.s32.totalorder %s43, %s46
      %p55 = scmp.eq.s32.totalorder %s24, 1
      %p56 = por %p54, %p55
      %p57 = scmp.ne.s32.totalorder %s46, %s47
      %p58 = scmp.eq.s32.totalorder %s24, 0
      %p59 = por %p57, %p58
      %p60 = scmp.ne.s32.totalorder %s46, %s47
      %p61 = scmp.eq.s32.totalorder %s25, 1
      %p62 = por %p60, %p61
      %p64 = scmp.ne.s32.totalorder %s47, %s63
      %p65 = scmp.eq.s32.totalorder %s25, 0
      %p66 = por %p64, %p65
      %s67 = ssub.s32 %s27, %s34
      %p68 = scmp.eq.s32.totalorder %s67, 0
      %s70 = sadd.s32 %s69, 1
      %s71 = scalar_select %p68, %s69, %s70
      %p74 = pneg %p68
      %p75 = scmp.eq.s32.totalorder %s19, 1
      %p76 = por %p74, %p75
      %p77 = scmp.ne.s32.totalorder %s69, %s72
      %p78 = scmp.eq.s32.totalorder %s19, 0
      %p79 = por %p77, %p78
      %p80 = scmp.ne.s32.totalorder %s69, %s72
      %p81 = scmp.eq.s32.totalorder %s24, 1
      %p82 = por %p80, %p81
      %p83 = scmp.ne.s32.totalorder %s72, %s73
      %p84 = scmp.eq.s32.totalorder %s24, 0
      %p85 = por %p83, %p84
      %p86 = scmp.ne.s32.totalorder %s72, %s73
      %p87 = scmp.eq.s32.totalorder %s25, 1
      %p88 = por %p86, %p87
      %p90 = scmp.ne.s32.totalorder %s73, %s89
      %p91 = scmp.eq.s32.totalorder %s25, 0
      %p92 = por %p90, %p91
      %s94 = sadd.s32 %s93, 1
      %p97 = scmp.eq.s32.totalorder %s19, 1
      %p98 = scmp.ne.s32.totalorder %s93, %s95
      %p99 = scmp.eq.s32.totalorder %s19, 0
      %p100 = por %p98, %p99
      %p101 = scmp.ne.s32.totalorder %s93, %s95
      %p102 = scmp.eq.s32.totalorder %s24, 1
      %p103 = por %p101, %p102
      %p104 = scmp.ne.s32.totalorder %s95, %s96
      %p105 = scmp.eq.s32.totalorder %s24, 0
      %p106 = por %p104, %p105
      %p107 = scmp.ne.s32.totalorder %s95, %s96
      %p108 = scmp.eq.s32.totalorder %s25, 1
      %p109 = por %p107, %p108
      %p111 = scmp.ne.s32.totalorder %s96, %s110
      %p112 = scmp.eq.s32.totalorder %s25, 0
      %p113 = por %p111, %p112
      %s115 = sadd.s32 %s114, 1
      %p118 = scmp.eq.s32.totalorder %s19, 1
      %p119 = scmp.ne.s32.totalorder %s114, %s116
      %p120 = scmp.eq.s32.totalorder %s19, 0
      %p121 = por %p119, %p120
      %p122 = scmp.ne.s32.totalorder %s114, %s116
      %p123 = scmp.eq.s32.totalorder %s24, 1
      %p124 = por %p122, %p123
      %p125 = scmp.ne.s32.totalorder %s116, %s117
      %p126 = scmp.eq.s32.totalorder %s24, 0
      %p127 = por %p125, %p126
      %p128 = scmp.ne.s32.totalorder %s116, %s117
      %p129 = scmp.eq.s32.totalorder %s25, 1
      %p130 = por %p128, %p129
      %p132 = scmp.ne.s32.totalorder %s117, %s131
      %p133 = scmp.eq.s32.totalorder %s25, 0
      %p134 = por %p132, %p133
      %s136 = sadd.s32 %s135, 1
      %p139 = scmp.eq.s32.totalorder %s19, 1
      %p140 = scmp.ne.s32.totalorder %s135, %s137
      %p141 = scmp.eq.s32.totalorder %s19, 0
      %p142 = por %p140, %p141
      %p143 = scmp.ne.s32.totalorder %s135, %s137
      %p144 = scmp.eq.s32.totalorder %s24, 1
      %p145 = por %p143, %p144
      %p146 = scmp.ne.s32.totalorder %s137, %s138
      %p147 = scmp.eq.s32.totalorder %s24, 0
      %p148 = por %p146, %p147
      %p149 = scmp.ne.s32.totalorder %s137, %s138
      %p150 = scmp.eq.s32.totalorder %s25, 1
      %p151 = por %p149, %p150
      %p153 = scmp.ne.s32.totalorder %s138, %s152
      %p154 = scmp.eq.s32.totalorder %s25, 0
      %p155 = por %p153, %p154
      %s156 = ssub.s32 %s26, %s38
      %p157 = scmp.eq.s32.totalorder %s156, 0
      %s159 = sadd.s32 %s158, 1
      %s160 = scalar_select %p157, %s158, %s159
      %p163 = pneg %p157
      %p164 = scmp.eq.s32.totalorder %s19, 1
      %p165 = por %p163, %p164
      %p166 = scmp.ne.s32.totalorder %s158, %s161
      %p167 = scmp.eq.s32.totalorder %s19, 0
      %p168 = por %p166, %p167
      %p169 = scmp.ne.s32.totalorder %s158, %s161
      %p170 = scmp.eq.s32.totalorder %s24, 1
      %p171 = por %p169, %p170
      %p172 = scmp.ne.s32.totalorder %s161, %s162
      %p173 = scmp.eq.s32.totalorder %s24, 0
      %p174 = por %p172, %p173
      %p175 = scmp.ne.s32.totalorder %s161, %s162
      %p176 = scmp.eq.s32.totalorder %s25, 1
      %p177 = por %p175, %p176
      %p179 = scmp.ne.s32.totalorder %s162, %s178
      %p180 = scmp.eq.s32.totalorder %s25, 0
      %p181 = por %p179, %p180
      %p182 = scmp.le.s32.totalorder 1, %s19
      %p183 = scmp.lt.s32.totalorder %s19, 3
      %p184 = pnand %p182, %p183
      %p185 = pneg %p184
      // Predicated region
      $region9: #{tpu_custom_call.1} parent=5 // pred_check
        _
      $region10: #{tpu_custom_call.1} parent=5 // pred_check_branch
        %187 = sbr.rel (%p184) target = $region12
      $region11: #{tpu_custom_call.1} parent=5 // pred_region
        %s188 = ssub.s32 %s19, 1
        // Predicated region
        $region13: #{tpu_custom_call.1} parent=11 // pred_check
          %p189 = pneg %p106
        $region14: #{tpu_custom_call.1} parent=11 // pred_check_branch
          %191 = sbr.rel (%p189) target = $region16
        $region15: #{tpu_custom_call.1} parent=11 // pred_region
          %193 = vsyncadd [#allocation7], 0
          %s195 = sshll.u32 %s2, 4
          %s196 = int_to_ptr.hbm [resolvable:$true] %s195
          %s197 = sshll.u32 [#allocation8], 4
          %s198 = int_to_ptr.vmem [resolvable:$true] %s197
          %200 = dma.hbm_to_vmem [thread:$0]  %s196, 64, %s198, [#allocation7]
        $region16: #{tpu_custom_call.1} parent=11 // pred_fallthru
          _
        // Predicated region
        $region17: #{tpu_custom_call.1} parent=11 // pred_check
          %p201 = pneg %p127
        $region18: #{tpu_custom_call.1} parent=11 // pred_check_branch
          %203 = sbr.rel (%p201) target = $region20
        $region19: #{tpu_custom_call.1} parent=11 // pred_region
          %205 = vsyncadd [#allocation10], 0
          %s206 = sshll.u32 %s3, 4
          %s207 = int_to_ptr.hbm [resolvable:$true] %s206
          %s208 = sshll.u32 [#allocation9], 4
          %s209 = int_to_ptr.vmem [resolvable:$true] %s208
          %214 = dma.hbm_to_vmem [thread:$0]  %s207, 8192, %s209, [#allocation10], 512, 512, 32
        $region20: #{tpu_custom_call.1} parent=11 // pred_fallthru
          _
        // Predicated region
        $region21: #{tpu_custom_call.1} parent=11 // pred_check
          %p215 = pneg %p148
        $region22: #{tpu_custom_call.1} parent=11 // pred_check_branch
          %217 = sbr.rel (%p215) target = $region24
        $region23: #{tpu_custom_call.1} parent=11 // pred_region
          _
        $region24: #{tpu_custom_call.1} parent=11 // pred_fallthru
          _
      $region12: #{tpu_custom_call.1} parent=5 // pred_fallthru
        _
      %p218 = scmp.lt.s32.totalorder %s19, 2
      // Predicated region
      $region25: #{tpu_custom_call.1} parent=5 // pred_check
        %p219 = pneg %p218
      $region26: #{tpu_custom_call.1} parent=5 // pred_check_branch
        %221 = sbr.rel (%p219) target = $region28
      $region27: #{tpu_custom_call.1} parent=5 // pred_region
        // Predicated region
        $region29: #{tpu_custom_call.1} parent=27 // pred_check
          %p222 = pneg %p53
        $region30: #{tpu_custom_call.1} parent=27 // pred_check_branch
          %224 = sbr.rel (%p222) target = $region32
        $region31: #{tpu_custom_call.1} parent=27 // pred_region
          %s225 = sand.u32 %s43, 1
          %s226 = scalar_lea.sflag [#allocation4], %s225
          %s227 = sand.u32 %s43, 1
          %s228 = smul.addr %s227, 16
          %s229 = scalar_lea.vmem [#allocation3], %s228
          %s230 = smul.u32 4, %s27
          %232 = vsyncadd %s226, 0
          %s233 = smul.addr %s26, 8
          %s234 = sadd.s32 %s230, %s233
          %s235 = smul.addr %s234, 4
          %s236 = scalar_lea.hbm %s0, %s235
          %s238 = sshll.u32 %s236, 4
          %s239 = int_to_ptr.hbm [resolvable:$true] %s238
          %s240 = sshll.u32 %s229, 4
          %s241 = int_to_ptr.vmem [resolvable:$true] %s240
          %243 = dma.hbm_to_vmem [thread:$0]  %s239, 256, %s241, %s226
        $region32: #{tpu_custom_call.1} parent=27 // pred_fallthru
          _
        // Predicated region
        $region33: #{tpu_custom_call.1} parent=27 // pred_check
          %p244 = pneg %p79
        $region34: #{tpu_custom_call.1} parent=27 // pred_check_branch
          %246 = sbr.rel (%p244) target = $region36
        $region35: #{tpu_custom_call.1} parent=27 // pred_region
          %s247 = sand.u32 %s19, 1
          %s248 = scalar_lea.sflag [#allocation7], %s247
          %s249 = sand.u32 %s69, 1
          %s250 = smul.addr %s249, 1024
          %s251 = scalar_lea.vmem [#allocation6], %s250
          %s252 = smul.u32 64, %s27
          %254 = vsyncadd %s248, 0
          %s255 = smul.addr %s252, 4
          %s256 = smul.addr %s255, 4
          %s257 = scalar_lea.hbm %s1, %s256
          %s258 = sshll.u32 %s257, 4
          %s259 = int_to_ptr.hbm [resolvable:$true] %s258
          %s260 = sshll.u32 %s251, 4
          %s261 = int_to_ptr.vmem [resolvable:$true] %s260
          %266 = dma.hbm_to_vmem [thread:$0]  %s259, 16384, %s261, %s248, 256, 256, 16
        $region36: #{tpu_custom_call.1} parent=27 // pred_fallthru
          _
      $region28: #{tpu_custom_call.1} parent=5 // pred_fallthru
        _
      %p267 = scmp.le.s32.totalorder 1, %s19
      %p268 = scmp.lt.s32.totalorder %s19, 3
      %p269 = pnand %p267, %p268
      %p270 = pneg %p269
      // Predicated region
      $region37: #{tpu_custom_call.1} parent=5 // pred_check
        _
      $region38: #{tpu_custom_call.1} parent=5 // pred_check_branch
        %272 = sbr.rel (%p269) target = $region40
      $region39: #{tpu_custom_call.1} parent=5 // pred_region
        %s273 = ssub.s32 %s19, 1
        %s274 = sand.u32 %s46, 1
        %s275 = scalar_lea.sflag [#allocation4], %s274
        %s276 = sand.u32 %s46, 1
        %s277 = smul.addr %s276, 16
        %s278 = scalar_lea.vmem [#allocation3], %s277
        // Predicated region
        $region41: #{tpu_custom_call.1} parent=39 // pred_check
          %p279 = pneg %p59
        $region42: #{tpu_custom_call.1} parent=39 // pred_check_branch
          %281 = sbr.rel (%p279) target = $region44
        $region43: #{tpu_custom_call.1} parent=39 // pred_region
          %283 = dma.done %s275, 256
        $region44: #{tpu_custom_call.1} parent=39 // pred_fallthru
          _
        %s284 = sand.u32 %s24, 1
        %s285 = scalar_lea.sflag [#allocation7], %s284
        %s286 = sand.u32 %s72, 1
        %s287 = smul.addr %s286, 1024
        %s288 = scalar_lea.vmem [#allocation6], %s287
        // Predicated region
        $region45: #{tpu_custom_call.1} parent=39 // pred_check
          %p289 = pneg %p85
        $region46: #{tpu_custom_call.1} parent=39 // pred_check_branch
          %291 = sbr.rel (%p289) target = $region48
        $region47: #{tpu_custom_call.1} parent=39 // pred_region
          %293 = dma.done %s285, 16384
        $region48: #{tpu_custom_call.1} parent=39 // pred_fallthru
          _
        // Predicated region
        $region49: #{tpu_custom_call.1} parent=39 // pred_check
          %p294 = pneg %p106
        $region50: #{tpu_custom_call.1} parent=39 // pred_check_branch
          %296 = sbr.rel (%p294) target = $region52
        $region51: #{tpu_custom_call.1} parent=39 // pred_region
          %298 = dma.done [#allocation7], 64
        $region52: #{tpu_custom_call.1} parent=39 // pred_fallthru
          _
        // Predicated region
        $region53: #{tpu_custom_call.1} parent=39 // pred_check
          %p299 = pneg %p127
        $region54: #{tpu_custom_call.1} parent=39 // pred_check_branch
          %301 = sbr.rel (%p299) target = $region56
        $region55: #{tpu_custom_call.1} parent=39 // pred_region
          %303 = dma.done [#allocation10], 8192
        $region56: #{tpu_custom_call.1} parent=39 // pred_fallthru
          _
        %s304 = sand.u32 %s46, 1
        %s305 = scalar_lea.sflag [#allocation4], %s304
        %s306 = sand.u32 %s46, 1
        %s307 = smul.addr %s306, 16
        %s308 = scalar_lea.vmem [#allocation3], %s307
        %p309 = pneg %p59
        %p310 = pneg %p56
        %s311 = sand.u32 %s24, 1
        %s312 = scalar_lea.sflag [#allocation7], %s311
        %s313 = sand.u32 %s72, 1
        %s314 = smul.addr %s313, 1024
        %s315 = scalar_lea.vmem [#allocation6], %s314
        %p316 = pneg %p85
        %p317 = pneg %p82
        %p318 = pneg %p106
        %p319 = pneg %p103
        %p320 = pneg %p127
        %p321 = pneg %p124
        %p322 = pneg %p148
        %p323 = pneg %p145
        %p324 = pneg %p174
        %p325 = pneg %p171
        %s326 = smul.u32 4, %s29
        %s327 = smul.u32 64, %s29
        %p328 = scmp.eq.s32.totalorder %s29, 0
        // Predicated region
        $region57: #{tpu_custom_call.1} parent=39 // pred_check
          %p329 = pneg %p328
        $region58: #{tpu_custom_call.1} parent=39 // pred_check_branch
          %331 = sbr.rel (%p329) target = $region60
        $region59: #{tpu_custom_call.1} parent=39 // pred_region
          %332 = vst [vmem:[#allocation2] sm:$0xff] 0.0
          %333 = vst [vmem:[#allocation2 + $0x8] sm:$0xff] 0.0
          %334 = vst [vmem:[#allocation2 + $0x10] sm:$0xff] 0.0
          %335 = vst [vmem:[#allocation2 + $0x18] sm:$0xff] 0.0
        $region60: #{tpu_custom_call.1} parent=39 // pred_fallthru
          _
        %v336 = vld [vmem:[#allocation2] sm:$0xff]
        %v337 = vld [vmem:[#allocation2 + $0x8] sm:$0xff]
        %v338 = vld [vmem:[#allocation2 + $0x10] sm:$0xff]
        %v339 = vld [vmem:[#allocation2 + $0x18] sm:$0xff]
        %v340 = vld [vmem:[%s278] sm:$0xff]
        %v341 = vld [vmem:[%s278 + $0x8] sm:$0xff]
        %v342 = vld [vmem:[%s288] sm:$0xff]
        %v343 = vld [vmem:[%s288 + $0x8] sm:$0xff]
        %v344 = vld [vmem:[%s288 + $0x10] sm:$0xff]
        %v345 = vld [vmem:[%s288 + $0x18] sm:$0xff]
        %v346 = vld [vmem:[%s288 + $0x20] sm:$0xff]
        %v347 = vld [vmem:[%s288 + $0x28] sm:$0xff]
        %v348 = vld [vmem:[%s288 + $0x30] sm:$0xff]
        %v349 = vld [vmem:[%s288 + $0x38] sm:$0xff]
        %v350 = vld [vmem:[%s288 + $0x40] sm:$0xff]
        %v351 = vld [vmem:[%s288 + $0x48] sm:$0xff]
        %v352 = vld [vmem:[%s288 + $0x50] sm:$0xff]
        %v353 = vld [vmem:[%s288 + $0x58] sm:$0xff]
        %v354 = vld [vmem:[%s288 + $0x60] sm:$0xff]
        %v355 = vld [vmem:[%s288 + $0x68] sm:$0xff]
        %v356 = vld [vmem:[%s288 + $0x70] sm:$0xff]
        %v357 = vld [vmem:[%s288 + $0x78] sm:$0xff]
        %v358 = vld [vmem:[%s288 + $0x80] sm:$0xff]
        %v359 = vld [vmem:[%s288 + $0x88] sm:$0xff]
        %v360 = vld [vmem:[%s288 + $0x90] sm:$0xff]
        %v361 = vld [vmem:[%s288 + $0x98] sm:$0xff]
        %v362 = vld [vmem:[%s288 + $0xa0] sm:$0xff]
        %v363 = vld [vmem:[%s288 + $0xa8] sm:$0xff]
        %v364 = vld [vmem:[%s288 + $0xb0] sm:$0xff]
        %v365 = vld [vmem:[%s288 + $0xb8] sm:$0xff]
        %v366 = vld [vmem:[%s288 + $0xc0] sm:$0xff]
        %v367 = vld [vmem:[%s288 + $0xc8] sm:$0xff]
        %v368 = vld [vmem:[%s288 + $0xd0] sm:$0xff]
        %v369 = vld [vmem:[%s288 + $0xd8] sm:$0xff]
        %v370 = vld [vmem:[%s288 + $0xe0] sm:$0xff]
        %v371 = vld [vmem:[%s288 + $0xe8] sm:$0xff]
        %v372 = vld [vmem:[%s288 + $0xf0] sm:$0xff]
        %v373 = vld [vmem:[%s288 + $0xf8] sm:$0xff]
        %v374 = vld [vmem:[%s288 + $0x100] sm:$0xff]
        %v375 = vld [vmem:[%s288 + $0x108] sm:$0xff]
        %v376 = vld [vmem:[%s288 + $0x110] sm:$0xff]
        %v377 = vld [vmem:[%s288 + $0x118] sm:$0xff]
        %v378 = vld [vmem:[%s288 + $0x120] sm:$0xff]
        %v379 = vld [vmem:[%s288 + $0x128] sm:$0xff]
        %v380 = vld [vmem:[%s288 + $0x130] sm:$0xff]
        %v381 = vld [vmem:[%s288 + $0x138] sm:$0xff]
        %v382 = vld [vmem:[%s288 + $0x140] sm:$0xff]
        %v383 = vld [vmem:[%s288 + $0x148] sm:$0xff]
        %v384 = vld [vmem:[%s288 + $0x150] sm:$0xff]
        %v385 = vld [vmem:[%s288 + $0x158] sm:$0xff]
        %v386 = vld [vmem:[%s288 + $0x160] sm:$0xff]
        %v387 = vld [vmem:[%s288 + $0x168] sm:$0xff]
        %v388 = vld [vmem:[%s288 + $0x170] sm:$0xff]
        %v389 = vld [vmem:[%s288 + $0x178] sm:$0xff]
        %v390 = vld [vmem:[%s288 + $0x180] sm:$0xff]
        %v391 = vld [vmem:[%s288 + $0x188] sm:$0xff]
        %v392 = vld [vmem:[%s288 + $0x190] sm:$0xff]
        %v393 = vld [vmem:[%s288 + $0x198] sm:$0xff]
        %v394 = vld [vmem:[%s288 + $0x1a0] sm:$0xff]
        %v395 = vld [vmem:[%s288 + $0x1a8] sm:$0xff]
        %v396 = vld [vmem:[%s288 + $0x1b0] sm:$0xff]
        %v397 = vld [vmem:[%s288 + $0x1b8] sm:$0xff]
        %v398 = vld [vmem:[%s288 + $0x1c0] sm:$0xff]
        %v399 = vld [vmem:[%s288 + $0x1c8] sm:$0xff]
        %v400 = vld [vmem:[%s288 + $0x1d0] sm:$0xff]
        %v401 = vld [vmem:[%s288 + $0x1d8] sm:$0xff]
        %v402 = vld [vmem:[%s288 + $0x1e0] sm:$0xff]
        %v403 = vld [vmem:[%s288 + $0x1e8] sm:$0xff]
        %v404 = vld [vmem:[%s288 + $0x1f0] sm:$0xff]
        %v405 = vld [vmem:[%s288 + $0x1f8] sm:$0xff]
        %v406 = vld [vmem:[%s288 + $0x200] sm:$0xff]
        %v407 = vld [vmem:[%s288 + $0x208] sm:$0xff]
        %v408 = vld [vmem:[%s288 + $0x210] sm:$0xff]
        %v409 = vld [vmem:[%s288 + $0x218] sm:$0xff]
        %v410 = vld [vmem:[%s288 + $0x220] sm:$0xff]
        %v411 = vld [vmem:[%s288 + $0x228] sm:$0xff]
        %v412 = vld [vmem:[%s288 + $0x230] sm:$0xff]
        %v413 = vld [vmem:[%s288 + $0x238] sm:$0xff]
        %v414 = vld [vmem:[%s288 + $0x240] sm:$0xff]
        %v415 = vld [vmem:[%s288 + $0x248] sm:$0xff]
        %v416 = vld [vmem:[%s288 + $0x250] sm:$0xff]
        %v417 = vld [vmem:[%s288 + $0x258] sm:$0xff]
        %v418 = vld [vmem:[%s288 + $0x260] sm:$0xff]
        %v419 = vld [vmem:[%s288 + $0x268] sm:$0xff]
        %v420 = vld [vmem:[%s288 + $0x270] sm:$0xff]
        %v421 = vld [vmem:[%s288 + $0x278] sm:$0xff]
        %v422 = vld [vmem:[%s288 + $0x280] sm:$0xff]
        %v423 = vld [vmem:[%s288 + $0x288] sm:$0xff]
        %v424 = vld [vmem:[%s288 + $0x290] sm:$0xff]
        %v425 = vld [vmem:[%s288 + $0x298] sm:$0xff]
        %v426 = vld [vmem:[%s288 + $0x2a0] sm:$0xff]
        %v427 = vld [vmem:[%s288 + $0x2a8] sm:$0xff]
        %v428 = vld [vmem:[%s288 + $0x2b0] sm:$0xff]
        %v429 = vld [vmem:[%s288 + $0x2b8] sm:$0xff]
        %v430 = vld [vmem:[%s288 + $0x2c0] sm:$0xff]
        %v431 = vld [vmem:[%s288 + $0x2c8] sm:$0xff]
        %v432 = vld [vmem:[%s288 + $0x2d0] sm:$0xff]
        %v433 = vld [vmem:[%s288 + $0x2d8] sm:$0xff]
        %v434 = vld [vmem:[%s288 + $0x2e0] sm:$0xff]
        %v435 = vld [vmem:[%s288 + $0x2e8] sm:$0xff]
        %v436 = vld [vmem:[%s288 + $0x2f0] sm:$0xff]
        %v437 = vld [vmem:[%s288 + $0x2f8] sm:$0xff]
        %v438 = vld [vmem:[%s288 + $0x300] sm:$0xff]
        %v439 = vld [vmem:[%s288 + $0x308] sm:$0xff]
        %v440 = vld [vmem:[%s288 + $0x310] sm:$0xff]
        %v441 = vld [vmem:[%s288 + $0x318] sm:$0xff]
        %v442 = vld [vmem:[%s288 + $0x320] sm:$0xff]
        %v443 = vld [vmem:[%s288 + $0x328] sm:$0xff]
        %v444 = vld [vmem:[%s288 + $0x330] sm:$0xff]
        %v445 = vld [vmem:[%s288 + $0x338] sm:$0xff]
        %v446 = vld [vmem:[%s288 + $0x340] sm:$0xff]
        %v447 = vld [vmem:[%s288 + $0x348] sm:$0xff]
        %v448 = vld [vmem:[%s288 + $0x350] sm:$0xff]
        %v449 = vld [vmem:[%s288 + $0x358] sm:$0xff]
        %v450 = vld [vmem:[%s288 + $0x360] sm:$0xff]
        %v451 = vld [vmem:[%s288 + $0x368] sm:$0xff]
        %v452 = vld [vmem:[%s288 + $0x370] sm:$0xff]
        %v453 = vld [vmem:[%s288 + $0x378] sm:$0xff]
        %v454 = vld [vmem:[%s288 + $0x380] sm:$0xff]
        %v455 = vld [vmem:[%s288 + $0x388] sm:$0xff]
        %v456 = vld [vmem:[%s288 + $0x390] sm:$0xff]
        %v457 = vld [vmem:[%s288 + $0x398] sm:$0xff]
        %v458 = vld [vmem:[%s288 + $0x3a0] sm:$0xff]
        %v459 = vld [vmem:[%s288 + $0x3a8] sm:$0xff]
        %v460 = vld [vmem:[%s288 + $0x3b0] sm:$0xff]
        %v461 = vld [vmem:[%s288 + $0x3b8] sm:$0xff]
        %v462 = vld [vmem:[%s288 + $0x3c0] sm:$0xff]
        %v463 = vld [vmem:[%s288 + $0x3c8] sm:$0xff]
        %v464 = vld [vmem:[%s288 + $0x3d0] sm:$0xff]
        %v465 = vld [vmem:[%s288 + $0x3d8] sm:$0xff]
        %v466 = vld [vmem:[%s288 + $0x3e0] sm:$0xff]
        %v467 = vld [vmem:[%s288 + $0x3e8] sm:$0xff]
        %v468 = vld [vmem:[%s288 + $0x3f0] sm:$0xff]
        %v469 = vld [vmem:[%s288 + $0x3f8] sm:$0xff]
        %v472 = vunpack.c.l.b16 %v340
        %v473 = vunpack.c.h.b16 %v340
        %v474 = vunpack.c.l.b16 %v341
        %v475 = vunpack.c.h.b16 %v341
        %v476 = vpack.c.b16 %v472, %v472
        %v477 = vpack.c.b16 %v473, %v473
        %v478 = vpack.c.b16 %v474, %v474
        %v479 = vpack.c.b16 %v475, %v475
        %v612 = vunpack.c.l.b16 %v342
        %v613 = vunpack.c.h.b16 %v342
        %v614 = vunpack.c.l.b16 %v343
        %v615 = vunpack.c.h.b16 %v343
        %v616 = vunpack.c.l.b16 %v344
        %v617 = vunpack.c.h.b16 %v344
        %v618 = vunpack.c.l.b16 %v345
        %v619 = vunpack.c.h.b16 %v345
        %v620 = vunpack.c.l.b16 %v346
        %v621 = vunpack.c.h.b16 %v346
        %v622 = vunpack.c.l.b16 %v347
        %v623 = vunpack.c.h.b16 %v347
        %v624 = vunpack.c.l.b16 %v348
        %v625 = vunpack.c.h.b16 %v348
        %v626 = vunpack.c.l.b16 %v349
        %v627 = vunpack.c.h.b16 %v349
        %v628 = vunpack.c.l.b16 %v350
        %v629 = vunpack.c.h.b16 %v350
        %v630 = vunpack.c.l.b16 %v351
        %v631 = vunpack.c.h.b16 %v351
        %v632 = vunpack.c.l.b16 %v352
        %v633 = vunpack.c.h.b16 %v352
        %v634 = vunpack.c.l.b16 %v353
        %v635 = vunpack.c.h.b16 %v353
        %v636 = vunpack.c.l.b16 %v354
        %v637 = vunpack.c.h.b16 %v354
        %v638 = vunpack.c.l.b16 %v355
        %v639 = vunpack.c.h.b16 %v355
        %v640 = vunpack.c.l.b16 %v356
        %v641 = vunpack.c.h.b16 %v356
        %v642 = vunpack.c.l.b16 %v357
        %v643 = vunpack.c.h.b16 %v357
        %v644 = vunpack.c.l.b16 %v358
        %v645 = vunpack.c.h.b16 %v358
        %v646 = vunpack.c.l.b16 %v359
        %v647 = vunpack.c.h.b16 %v359
        %v648 = vunpack.c.l.b16 %v360
        %v649 = vunpack.c.h.b16 %v360
        %v650 = vunpack.c.l.b16 %v361
        %v651 = vunpack.c.h.b16 %v361
        %v652 = vunpack.c.l.b16 %v362
        %v653 = vunpack.c.h.b16 %v362
        %v654 = vunpack.c.l.b16 %v363
        %v655 = vunpack.c.h.b16 %v363
        %v656 = vunpack.c.l.b16 %v364
        %v657 = vunpack.c.h.b16 %v364
        %v658 = vunpack.c.l.b16 %v365
        %v659 = vunpack.c.h.b16 %v365
        %v660 = vunpack.c.l.b16 %v366
        %v661 = vunpack.c.h.b16 %v366
        %v662 = vunpack.c.l.b16 %v367
        %v663 = vunpack.c.h.b16 %v367
        %v664 = vunpack.c.l.b16 %v368
        %v665 = vunpack.c.h.b16 %v368
        %v666 = vunpack.c.l.b16 %v369
        %v667 = vunpack.c.h.b16 %v369
        %v668 = vunpack.c.l.b16 %v370
        %v669 = vunpack.c.h.b16 %v370
        %v670 = vunpack.c.l.b16 %v371
        %v671 = vunpack.c.h.b16 %v371
        %v672 = vunpack.c.l.b16 %v372
        %v673 = vunpack.c.h.b16 %v372
        %v674 = vunpack.c.l.b16 %v373
        %v675 = vunpack.c.h.b16 %v373
        %v676 = vunpack.c.l.b16 %v374
        %v677 = vunpack.c.h.b16 %v374
        %v678 = vunpack.c.l.b16 %v375
        %v679 = vunpack.c.h.b16 %v375
        %v680 = vunpack.c.l.b16 %v376
        %v681 = vunpack.c.h.b16 %v376
        %v682 = vunpack.c.l.b16 %v377
        %v683 = vunpack.c.h.b16 %v377
        %v684 = vunpack.c.l.b16 %v378
        %v685 = vunpack.c.h.b16 %v378
        %v686 = vunpack.c.l.b16 %v379
        %v687 = vunpack.c.h.b16 %v379
        %v688 = vunpack.c.l.b16 %v380
        %v689 = vunpack.c.h.b16 %v380
        %v690 = vunpack.c.l.b16 %v381
        %v691 = vunpack.c.h.b16 %v381
        %v692 = vunpack.c.l.b16 %v382
        %v693 = vunpack.c.h.b16 %v382
        %v694 = vunpack.c.l.b16 %v383
        %v695 = vunpack.c.h.b16 %v383
        %v696 = vunpack.c.l.b16 %v384
        %v697 = vunpack.c.h.b16 %v384
        %v698 = vunpack.c.l.b16 %v385
        %v699 = vunpack.c.h.b16 %v385
        %v700 = vunpack.c.l.b16 %v386
        %v701 = vunpack.c.h.b16 %v386
        %v702 = vunpack.c.l.b16 %v387
        %v703 = vunpack.c.h.b16 %v387
        %v704 = vunpack.c.l.b16 %v388
        %v705 = vunpack.c.h.b16 %v388
        %v706 = vunpack.c.l.b16 %v389
        %v707 = vunpack.c.h.b16 %v389
        %v708 = vunpack.c.l.b16 %v390
        %v709 = vunpack.c.h.b16 %v390
        %v710 = vunpack.c.l.b16 %v391
        %v711 = vunpack.c.h.b16 %v391
        %v712 = vunpack.c.l.b16 %v392
        %v713 = vunpack.c.h.b16 %v392
        %v714 = vunpack.c.l.b16 %v393
        %v715 = vunpack.c.h.b16 %v393
        %v716 = vunpack.c.l.b16 %v394
        %v717 = vunpack.c.h.b16 %v394
        %v718 = vunpack.c.l.b16 %v395
        %v719 = vunpack.c.h.b16 %v395
        %v720 = vunpack.c.l.b16 %v396
        %v721 = vunpack.c.h.b16 %v396
        %v722 = vunpack.c.l.b16 %v397
        %v723 = vunpack.c.h.b16 %v397
        %v724 = vunpack.c.l.b16 %v398
        %v725 = vunpack.c.h.b16 %v398
        %v726 = vunpack.c.l.b16 %v399
        %v727 = vunpack.c.h.b16 %v399
        %v728 = vunpack.c.l.b16 %v400
        %v729 = vunpack.c.h.b16 %v400
        %v730 = vunpack.c.l.b16 %v401
        %v731 = vunpack.c.h.b16 %v401
        %v732 = vunpack.c.l.b16 %v402
        %v733 = vunpack.c.h.b16 %v402
        %v734 = vunpack.c.l.b16 %v403
        %v735 = vunpack.c.h.b16 %v403
        %v736 = vunpack.c.l.b16 %v404
        %v737 = vunpack.c.h.b16 %v404
        %v738 = vunpack.c.l.b16 %v405
        %v739 = vunpack.c.h.b16 %v405
        %v740 = vunpack.c.l.b16 %v406
        %v741 = vunpack.c.h.b16 %v406
        %v742 = vunpack.c.l.b16 %v407
        %v743 = vunpack.c.h.b16 %v407
        %v744 = vunpack.c.l.b16 %v408
        %v745 = vunpack.c.h.b16 %v408
        %v746 = vunpack.c.l.b16 %v409
        %v747 = vunpack.c.h.b16 %v409
        %v748 = vunpack.c.l.b16 %v410
        %v749 = vunpack.c.h.b16 %v410
        %v750 = vunpack.c.l.b16 %v411
        %v751 = vunpack.c.h.b16 %v411
        %v752 = vunpack.c.l.b16 %v412
        %v753 = vunpack.c.h.b16 %v412
        %v754 = vunpack.c.l.b16 %v413
        %v755 = vunpack.c.h.b16 %v413
        %v756 = vunpack.c.l.b16 %v414
        %v757 = vunpack.c.h.b16 %v414
        %v758 = vunpack.c.l.b16 %v415
        %v759 = vunpack.c.h.b16 %v415
        %v760 = vunpack.c.l.b16 %v416
        %v761 = vunpack.c.h.b16 %v416
        %v762 = vunpack.c.l.b16 %v417
        %v763 = vunpack.c.h.b16 %v417
        %v764 = vunpack.c.l.b16 %v418
        %v765 = vunpack.c.h.b16 %v418
        %v766 = vunpack.c.l.b16 %v419
        %v767 = vunpack.c.h.b16 %v419
        %v768 = vunpack.c.l.b16 %v420
        %v769 = vunpack.c.h.b16 %v420
        %v770 = vunpack.c.l.b16 %v421
        %v771 = vunpack.c.h.b16 %v421
        %v772 = vunpack.c.l.b16 %v422
        %v773 = vunpack.c.h.b16 %v422
        %v774 = vunpack.c.l.b16 %v423
        %v775 = vunpack.c.h.b16 %v423
        %v776 = vunpack.c.l.b16 %v424
        %v777 = vunpack.c.h.b16 %v424
        %v778 = vunpack.c.l.b16 %v425
        %v779 = vunpack.c.h.b16 %v425
        %v780 = vunpack.c.l.b16 %v426
        %v781 = vunpack.c.h.b16 %v426
        %v782 = vunpack.c.l.b16 %v427
        %v783 = vunpack.c.h.b16 %v427
        %v784 = vunpack.c.l.b16 %v428
        %v785 = vunpack.c.h.b16 %v428
        %v786 = vunpack.c.l.b16 %v429
        %v787 = vunpack.c.h.b16 %v429
        %v788 = vunpack.c.l.b16 %v430
        %v789 = vunpack.c.h.b16 %v430
        %v790 = vunpack.c.l.b16 %v431
        %v791 = vunpack.c.h.b16 %v431
        %v792 = vunpack.c.l.b16 %v432
        %v793 = vunpack.c.h.b16 %v432
        %v794 = vunpack.c.l.b16 %v433
        %v795 = vunpack.c.h.b16 %v433
        %v796 = vunpack.c.l.b16 %v434
        %v797 = vunpack.c.h.b16 %v434
        %v798 = vunpack.c.l.b16 %v435
        %v799 = vunpack.c.h.b16 %v435
        %v800 = vunpack.c.l.b16 %v436
        %v801 = vunpack.c.h.b16 %v436
        %v802 = vunpack.c.l.b16 %v437
        %v803 = vunpack.c.h.b16 %v437
        %v804 = vunpack.c.l.b16 %v438
        %v805 = vunpack.c.h.b16 %v438
        %v806 = vunpack.c.l.b16 %v439
        %v807 = vunpack.c.h.b16 %v439
        %v808 = vunpack.c.l.b16 %v440
        %v809 = vunpack.c.h.b16 %v440
        %v810 = vunpack.c.l.b16 %v441
        %v811 = vunpack.c.h.b16 %v441
        %v812 = vunpack.c.l.b16 %v442
        %v813 = vunpack.c.h.b16 %v442
        %v814 = vunpack.c.l.b16 %v443
        %v815 = vunpack.c.h.b16 %v443
        %v816 = vunpack.c.l.b16 %v444
        %v817 = vunpack.c.h.b16 %v444
        %v818 = vunpack.c.l.b16 %v445
        %v819 = vunpack.c.h.b16 %v445
        %v820 = vunpack.c.l.b16 %v446
        %v821 = vunpack.c.h.b16 %v446
        %v822 = vunpack.c.l.b16 %v447
        %v823 = vunpack.c.h.b16 %v447
        %v824 = vunpack.c.l.b16 %v448
        %v825 = vunpack.c.h.b16 %v448
        %v826 = vunpack.c.l.b16 %v449
        %v827 = vunpack.c.h.b16 %v449
        %v828 = vunpack.c.l.b16 %v450
        %v829 = vunpack.c.h.b16 %v450
        %v830 = vunpack.c.l.b16 %v451
        %v831 = vunpack.c.h.b16 %v451
        %v832 = vunpack.c.l.b16 %v452
        %v833 = vunpack.c.h.b16 %v452
        %v834 = vunpack.c.l.b16 %v453
        %v835 = vunpack.c.h.b16 %v453
        %v836 = vunpack.c.l.b16 %v454
        %v837 = vunpack.c.h.b16 %v454
        %v838 = vunpack.c.l.b16 %v455
        %v839 = vunpack.c.h.b16 %v455
        %v840 = vunpack.c.l.b16 %v456
        %v841 = vunpack.c.h.b16 %v456
        %v842 = vunpack.c.l.b16 %v457
        %v843 = vunpack.c.h.b16 %v457
        %v844 = vunpack.c.l.b16 %v458
        %v845 = vunpack.c.h.b16 %v458
        %v846 = vunpack.c.l.b16 %v459
        %v847 = vunpack.c.h.b16 %v459
        %v848 = vunpack.c.l.b16 %v460
        %v849 = vunpack.c.h.b16 %v460
        %v850 = vunpack.c.l.b16 %v461
        %v851 = vunpack.c.h.b16 %v461
        %v852 = vunpack.c.l.b16 %v462
        %v853 = vunpack.c.h.b16 %v462
        %v854 = vunpack.c.l.b16 %v463
        %v855 = vunpack.c.h.b16 %v463
        %v856 = vunpack.c.l.b16 %v464
        %v857 = vunpack.c.h.b16 %v464
        %v858 = vunpack.c.l.b16 %v465
        %v859 = vunpack.c.h.b16 %v465
        %v860 = vunpack.c.l.b16 %v466
        %v861 = vunpack.c.h.b16 %v466
        %v862 = vunpack.c.l.b16 %v467
        %v863 = vunpack.c.h.b16 %v467
        %v864 = vunpack.c.l.b16 %v468
        %v865 = vunpack.c.h.b16 %v468
        %v866 = vunpack.c.l.b16 %v469
        %v867 = vunpack.c.h.b16 %v469
        %v868 = vpack.c.b16 %v616, %v612
        %v869 = vpack.c.b16 %v617, %v613
        %v870 = vpack.c.b16 %v618, %v614
        %v871 = vpack.c.b16 %v619, %v615
        %v872 = vpack.c.b16 %v624, %v620
        %v873 = vpack.c.b16 %v625, %v621
        %v874 = vpack.c.b16 %v626, %v622
        %v875 = vpack.c.b16 %v627, %v623
        %v876 = vpack.c.b16 %v632, %v628
        %v877 = vpack.c.b16 %v633, %v629
        %v878 = vpack.c.b16 %v634, %v630
        %v879 = vpack.c.b16 %v635, %v631
        %v880 = vpack.c.b16 %v640, %v636
        %v881 = vpack.c.b16 %v641, %v637
        %v882 = vpack.c.b16 %v642, %v638
        %v883 = vpack.c.b16 %v643, %v639
        %v884 = vpack.c.b16 %v648, %v644
        %v885 = vpack.c.b16 %v649, %v645
        %v886 = vpack.c.b16 %v650, %v646
        %v887 = vpack.c.b16 %v651, %v647
        %v888 = vpack.c.b16 %v656, %v652
        %v889 = vpack.c.b16 %v657, %v653
        %v890 = vpack.c.b16 %v658, %v654
        %v891 = vpack.c.b16 %v659, %v655
        %v892 = vpack.c.b16 %v664, %v660
        %v893 = vpack.c.b16 %v665, %v661
        %v894 = vpack.c.b16 %v666, %v662
        %v895 = vpack.c.b16 %v667, %v663
        %v896 = vpack.c.b16 %v672, %v668
        %v897 = vpack.c.b16 %v673, %v669
        %v898 = vpack.c.b16 %v674, %v670
        %v899 = vpack.c.b16 %v675, %v671
        %v900 = vpack.c.b16 %v680, %v676
        %v901 = vpack.c.b16 %v681, %v677
        %v902 = vpack.c.b16 %v682, %v678
        %v903 = vpack.c.b16 %v683, %v679
        %v904 = vpack.c.b16 %v688, %v684
        %v905 = vpack.c.b16 %v689, %v685
        %v906 = vpack.c.b16 %v690, %v686
        %v907 = vpack.c.b16 %v691, %v687
        %v908 = vpack.c.b16 %v696, %v692
        %v909 = vpack.c.b16 %v697, %v693
        %v910 = vpack.c.b16 %v698, %v694
        %v911 = vpack.c.b16 %v699, %v695
        %v912 = vpack.c.b16 %v704, %v700
        %v913 = vpack.c.b16 %v705, %v701
        %v914 = vpack.c.b16 %v706, %v702
        %v915 = vpack.c.b16 %v707, %v703
        %v916 = vpack.c.b16 %v712, %v708
        %v917 = vpack.c.b16 %v713, %v709
        %v918 = vpack.c.b16 %v714, %v710
        %v919 = vpack.c.b16 %v715, %v711
        %v920 = vpack.c.b16 %v720, %v716
        %v921 = vpack.c.b16 %v721, %v717
        %v922 = vpack.c.b16 %v722, %v718
        %v923 = vpack.c.b16 %v723, %v719
        %v924 = vpack.c.b16 %v728, %v724
        %v925 = vpack.c.b16 %v729, %v725
        %v926 = vpack.c.b16 %v730, %v726
        %v927 = vpack.c.b16 %v731, %v727
        %v928 = vpack.c.b16 %v736, %v732
        %v929 = vpack.c.b16 %v737, %v733
        %v930 = vpack.c.b16 %v738, %v734
        %v931 = vpack.c.b16 %v739, %v735
        %v932 = vpack.c.b16 %v744, %v740
        %v933 = vpack.c.b16 %v745, %v741
        %v934 = vpack.c.b16 %v746, %v742
        %v935 = vpack.c.b16 %v747, %v743
        %v936 = vpack.c.b16 %v752, %v748
        %v937 = vpack.c.b16 %v753, %v749
        %v938 = vpack.c.b16 %v754, %v750
        %v939 = vpack.c.b16 %v755, %v751
        %v940 = vpack.c.b16 %v760, %v756
        %v941 = vpack.c.b16 %v761, %v757
        %v942 = vpack.c.b16 %v762, %v758
        %v943 = vpack.c.b16 %v763, %v759
        %v944 = vpack.c.b16 %v768, %v764
        %v945 = vpack.c.b16 %v769, %v765
        %v946 = vpack.c.b16 %v770, %v766
        %v947 = vpack.c.b16 %v771, %v767
        %v948 = vpack.c.b16 %v776, %v772
        %v949 = vpack.c.b16 %v777, %v773
        %v950 = vpack.c.b16 %v778, %v774
        %v951 = vpack.c.b16 %v779, %v775
        %v952 = vpack.c.b16 %v784, %v780
        %v953 = vpack.c.b16 %v785, %v781
        %v954 = vpack.c.b16 %v786, %v782
        %v955 = vpack.c.b16 %v787, %v783
        %v956 = vpack.c.b16 %v792, %v788
        %v957 = vpack.c.b16 %v793, %v789
        %v958 = vpack.c.b16 %v794, %v790
        %v959 = vpack.c.b16 %v795, %v791
        %v960 = vpack.c.b16 %v800, %v796
        %v961 = vpack.c.b16 %v801, %v797
        %v962 = vpack.c.b16 %v802, %v798
        %v963 = vpack.c.b16 %v803, %v799
        %v964 = vpack.c.b16 %v808, %v804
        %v965 = vpack.c.b16 %v809, %v805
        %v966 = vpack.c.b16 %v810, %v806
        %v967 = vpack.c.b16 %v811, %v807
        %v968 = vpack.c.b16 %v816, %v812
        %v969 = vpack.c.b16 %v817, %v813
        %v970 = vpack.c.b16 %v818, %v814
        %v971 = vpack.c.b16 %v819, %v815
        %v972 = vpack.c.b16 %v824, %v820
        %v973 = vpack.c.b16 %v825, %v821
        %v974 = vpack.c.b16 %v826, %v822
        %v975 = vpack.c.b16 %v827, %v823
        %v976 = vpack.c.b16 %v832, %v828
        %v977 = vpack.c.b16 %v833, %v829
        %v978 = vpack.c.b16 %v834, %v830
        %v979 = vpack.c.b16 %v835, %v831
        %v980 = vpack.c.b16 %v840, %v836
        %v981 = vpack.c.b16 %v841, %v837
        %v982 = vpack.c.b16 %v842, %v838
        %v983 = vpack.c.b16 %v843, %v839
        %v984 = vpack.c.b16 %v848, %v844
        %v985 = vpack.c.b16 %v849, %v845
        %v986 = vpack.c.b16 %v850, %v846
        %v987 = vpack.c.b16 %v851, %v847
        %v988 = vpack.c.b16 %v856, %v852
        %v989 = vpack.c.b16 %v857, %v853
        %v990 = vpack.c.b16 %v858, %v854
        %v991 = vpack.c.b16 %v859, %v855
        %v992 = vpack.c.b16 %v864, %v860
        %v993 = vpack.c.b16 %v865, %v861
        %v994 = vpack.c.b16 %v866, %v862
        %v995 = vpack.c.b16 %v867, %v863
        %1124 = vmatpush.bf16.msra.mxu0 %v896
        %1125 = vmatpush.bf16.msra.mxu0 %v892
        %1126 = vmatpush.bf16.msra.mxu0 %v888
        %1127 = vmatpush.bf16.msra.mxu0 %v884
        %1128 = vmatpush.bf16.msra.mxu0 %v880
        %1129 = vmatpush.bf16.msra.mxu0 %v876
        %1130 = vmatpush.bf16.msra.mxu0 %v872
        %1131 = vmatpush.bf16.msra.mxu0 %v868
        %1132 = vmatmul.bf16.gmra.mxu0 %v476
        %v1133 = vpop.f32.mrf.mxu0
        %v1134 = vadd.f32 0.0, %v1133
        %v1135 = vpop.f32.mrf.mxu0
        %1136 = vdwg.mxu0
        %1137 = vmatpush.bf16.msra.mxu0 %v928
        %1138 = vmatpush.bf16.msra.mxu0 %v924
        %1139 = vmatpush.bf16.msra.mxu0 %v920
        %1140 = vmatpush.bf16.msra.mxu0 %v916
        %1141 = vmatpush.bf16.msra.mxu0 %v912
        %1142 = vmatpush.bf16.msra.mxu0 %v908
        %1143 = vmatpush.bf16.msra.mxu0 %v904
        %1144 = vmatpush.bf16.msra.mxu0 %v900
        %1145 = vmatmul.bf16.gmra.mxu0 %v477
        %v1146 = vpop.f32.mrf.mxu0
        %v1147 = vadd.f32 %v1134, %v1146
        %v1148 = vpop.f32.mrf.mxu0
        %1149 = vdwg.mxu0
        %1150 = vmatpush.bf16.msra.mxu0 %v960
        %1151 = vmatpush.bf16.msra.mxu0 %v956
        %1152 = vmatpush.bf16.msra.mxu0 %v952
        %1153 = vmatpush.bf16.msra.mxu0 %v948
        %1154 = vmatpush.bf16.msra.mxu0 %v944
        %1155 = vmatpush.bf16.msra.mxu0 %v940
        %1156 = vmatpush.bf16.msra.mxu0 %v936
        %1157 = vmatpush.bf16.msra.mxu0 %v932
        %1158 = vmatmul.bf16.gmra.mxu0 %v478
        %v1159 = vpop.f32.mrf.mxu0
        %v1160 = vadd.f32 %v1147, %v1159
        %v1161 = vpop.f32.mrf.mxu0
        %1162 = vdwg.mxu0
        %1163 = vmatpush.bf16.msra.mxu0 %v992
        %1164 = vmatpush.bf16.msra.mxu0 %v988
        %1165 = vmatpush.bf16.msra.mxu0 %v984
        %1166 = vmatpush.bf16.msra.mxu0 %v980
        %1167 = vmatpush.bf16.msra.mxu0 %v976
        %1168 = vmatpush.bf16.msra.mxu0 %v972
        %1169 = vmatpush.bf16.msra.mxu0 %v968
        %1170 = vmatpush.bf16.msra.mxu0 %v964
        %1171 = vmatmul.bf16.gmra.mxu0 %v479
        %v1172 = vpop.f32.mrf.mxu0
        %v1173 = vadd.f32 %v1160, %v1172
        %v1174 = vpop.f32.mrf.mxu0
        %1175 = vdwg.mxu0
        %1176 = vmatpush.bf16.msra.mxu0 %v897
        %1177 = vmatpush.bf16.msra.mxu0 %v893
        %1178 = vmatpush.bf16.msra.mxu0 %v889
        %1179 = vmatpush.bf16.msra.mxu0 %v885
        %1180 = vmatpush.bf16.msra.mxu0 %v881
        %1181 = vmatpush.bf16.msra.mxu0 %v877
        %1182 = vmatpush.bf16.msra.mxu0 %v873
        %1183 = vmatpush.bf16.msra.mxu0 %v869
        %1184 = vmatmul.bf16.gmra.mxu0 %v476
        %v1185 = vpop.f32.mrf.mxu0
        %v1186 = vadd.f32 0.0, %v1185
        %v1187 = vpop.f32.mrf.mxu0
        %1188 = vdwg.mxu0
        %1189 = vmatpush.bf16.msra.mxu0 %v929
        %1190 = vmatpush.bf16.msra.mxu0 %v925
        %1191 = vmatpush.bf16.msra.mxu0 %v921
        %1192 = vmatpush.bf16.msra.mxu0 %v917
        %1193 = vmatpush.bf16.msra.mxu0 %v913
        %1194 = vmatpush.bf16.msra.mxu0 %v909
        %1195 = vmatpush.bf16.msra.mxu0 %v905
        %1196 = vmatpush.bf16.msra.mxu0 %v901
        %1197 = vmatmul.bf16.gmra.mxu0 %v477
        %v1198 = vpop.f32.mrf.mxu0
        %v1199 = vadd.f32 %v1186, %v1198
        %v1200 = vpop.f32.mrf.mxu0
        %1201 = vdwg.mxu0
        %1202 = vmatpush.bf16.msra.mxu0 %v961
        %1203 = vmatpush.bf16.msra.mxu0 %v957
        %1204 = vmatpush.bf16.msra.mxu0 %v953
        %1205 = vmatpush.bf16.msra.mxu0 %v949
        %1206 = vmatpush.bf16.msra.mxu0 %v945
        %1207 = vmatpush.bf16.msra.mxu0 %v941
        %1208 = vmatpush.bf16.msra.mxu0 %v937
        %1209 = vmatpush.bf16.msra.mxu0 %v933
        %1210 = vmatmul.bf16.gmra.mxu0 %v478
        %v1211 = vpop.f32.mrf.mxu0
        %v1212 = vadd.f32 %v1199, %v1211
        %v1213 = vpop.f32.mrf.mxu0
        %1214 = vdwg.mxu0
        %1215 = vmatpush.bf16.msra.mxu0 %v993
        %1216 = vmatpush.bf16.msra.mxu0 %v989
        %1217 = vmatpush.bf16.msra.mxu0 %v985
        %1218 = vmatpush.bf16.msra.mxu0 %v981
        %1219 = vmatpush.bf16.msra.mxu0 %v977
        %1220 = vmatpush.bf16.msra.mxu0 %v973
        %1221 = vmatpush.bf16.msra.mxu0 %v969
        %1222 = vmatpush.bf16.msra.mxu0 %v965
        %1223 = vmatmul.bf16.gmra.mxu0 %v479
        %v1224 = vpop.f32.mrf.mxu0
        %v1225 = vadd.f32 %v1212, %v1224
        %v1226 = vpop.f32.mrf.mxu0
        %1227 = vdwg.mxu0
        %1228 = vmatpush.bf16.msra.mxu0 %v898
        %1229 = vmatpush.bf16.msra.mxu0 %v894
        %1230 = vmatpush.bf16.msra.mxu0 %v890
        %1231 = vmatpush.bf16.msra.mxu0 %v886
        %1232 = vmatpush.bf16.msra.mxu0 %v882
        %1233 = vmatpush.bf16.msra.mxu0 %v878
        %1234 = vmatpush.bf16.msra.mxu0 %v874
        %1235 = vmatpush.bf16.msra.mxu0 %v870
        %1236 = vmatmul.bf16.gmra.mxu0 %v476
        %v1237 = vpop.f32.mrf.mxu0
        %v1238 = vadd.f32 0.0, %v1237
        %v1239 = vpop.f32.mrf.mxu0
        %1240 = vdwg.mxu0
        %1241 = vmatpush.bf16.msra.mxu0 %v930
        %1242 = vmatpush.bf16.msra.mxu0 %v926
        %1243 = vmatpush.bf16.msra.mxu0 %v922
        %1244 = vmatpush.bf16.msra.mxu0 %v918
        %1245 = vmatpush.bf16.msra.mxu0 %v914
        %1246 = vmatpush.bf16.msra.mxu0 %v910
        %1247 = vmatpush.bf16.msra.mxu0 %v906
        %1248 = vmatpush.bf16.msra.mxu0 %v902
        %1249 = vmatmul.bf16.gmra.mxu0 %v477
        %v1250 = vpop.f32.mrf.mxu0
        %v1251 = vadd.f32 %v1238, %v1250
        %v1252 = vpop.f32.mrf.mxu0
        %1253 = vdwg.mxu0
        %1254 = vmatpush.bf16.msra.mxu0 %v962
        %1255 = vmatpush.bf16.msra.mxu0 %v958
        %1256 = vmatpush.bf16.msra.mxu0 %v954
        %1257 = vmatpush.bf16.msra.mxu0 %v950
        %1258 = vmatpush.bf16.msra.mxu0 %v946
        %1259 = vmatpush.bf16.msra.mxu0 %v942
        %1260 = vmatpush.bf16.msra.mxu0 %v938
        %1261 = vmatpush.bf16.msra.mxu0 %v934
        %1262 = vmatmul.bf16.gmra.mxu0 %v478
        %v1263 = vpop.f32.mrf.mxu0
        %v1264 = vadd.f32 %v1251, %v1263
        %v1265 = vpop.f32.mrf.mxu0
        %1266 = vdwg.mxu0
        %1267 = vmatpush.bf16.msra.mxu0 %v994
        %1268 = vmatpush.bf16.msra.mxu0 %v990
        %1269 = vmatpush.bf16.msra.mxu0 %v986
        %1270 = vmatpush.bf16.msra.mxu0 %v982
        %1271 = vmatpush.bf16.msra.mxu0 %v978
        %1272 = vmatpush.bf16.msra.mxu0 %v974
        %1273 = vmatpush.bf16.msra.mxu0 %v970
        %1274 = vmatpush.bf16.msra.mxu0 %v966
        %1275 = vmatmul.bf16.gmra.mxu0 %v479
        %v1276 = vpop.f32.mrf.mxu0
        %v1277 = vadd.f32 %v1264, %v1276
        %v1278 = vpop.f32.mrf.mxu0
        %1279 = vdwg.mxu0
        %1280 = vmatpush.bf16.msra.mxu0 %v899
        %1281 = vmatpush.bf16.msra.mxu0 %v895
        %1282 = vmatpush.bf16.msra.mxu0 %v891
        %1283 = vmatpush.bf16.msra.mxu0 %v887
        %1284 = vmatpush.bf16.msra.mxu0 %v883
        %1285 = vmatpush.bf16.msra.mxu0 %v879
        %1286 = vmatpush.bf16.msra.mxu0 %v875
        %1287 = vmatpush.bf16.msra.mxu0 %v871
        %1288 = vmatmul.bf16.gmra.mxu0 %v476
        %v1289 = vpop.f32.mrf.mxu0
        %v1290 = vadd.f32 0.0, %v1289
        %v1291 = vpop.f32.mrf.mxu0
        %1292 = vdwg.mxu0
        %1293 = vmatpush.bf16.msra.mxu0 %v931
        %1294 = vmatpush.bf16.msra.mxu0 %v927
        %1295 = vmatpush.bf16.msra.mxu0 %v923
        %1296 = vmatpush.bf16.msra.mxu0 %v919
        %1297 = vmatpush.bf16.msra.mxu0 %v915
        %1298 = vmatpush.bf16.msra.mxu0 %v911
        %1299 = vmatpush.bf16.msra.mxu0 %v907
        %1300 = vmatpush.bf16.msra.mxu0 %v903
        %1301 = vmatmul.bf16.gmra.mxu0 %v477
        %v1302 = vpop.f32.mrf.mxu0
        %v1303 = vadd.f32 %v1290, %v1302
        %v1304 = vpop.f32.mrf.mxu0
        %1305 = vdwg.mxu0
        %1306 = vmatpush.bf16.msra.mxu0 %v963
        %1307 = vmatpush.bf16.msra.mxu0 %v959
        %1308 = vmatpush.bf16.msra.mxu0 %v955
        %1309 = vmatpush.bf16.msra.mxu0 %v951
        %1310 = vmatpush.bf16.msra.mxu0 %v947
        %1311 = vmatpush.bf16.msra.mxu0 %v943
        %1312 = vmatpush.bf16.msra.mxu0 %v939
        %1313 = vmatpush.bf16.msra.mxu0 %v935
        %1314 = vmatmul.bf16.gmra.mxu0 %v478
        %v1315 = vpop.f32.mrf.mxu0
        %v1316 = vadd.f32 %v1303, %v1315
        %v1317 = vpop.f32.mrf.mxu0
        %1318 = vdwg.mxu0
        %1319 = vmatpush.bf16.msra.mxu0 %v995
        %1320 = vmatpush.bf16.msra.mxu0 %v991
        %1321 = vmatpush.bf16.msra.mxu0 %v987
        %1322 = vmatpush.bf16.msra.mxu0 %v983
        %1323 = vmatpush.bf16.msra.mxu0 %v979
        %1324 = vmatpush.bf16.msra.mxu0 %v975
        %1325 = vmatpush.bf16.msra.mxu0 %v971
        %1326 = vmatpush.bf16.msra.mxu0 %v967
        %1327 = vmatmul.bf16.gmra.mxu0 %v479
        %v1328 = vpop.f32.mrf.mxu0
        %v1329 = vadd.f32 %v1316, %v1328
        %v1330 = vpop.f32.mrf.mxu0
        %1331 = vdwg.mxu0
        %v1332 = vadd.f32 %v336, %v1173
        %v1333 = vadd.f32 %v337, %v1225
        %v1334 = vadd.f32 %v338, %v1277
        %v1335 = vadd.f32 %v339, %v1329
        %1336 = vst [vmem:[#allocation2] sm:$0xff] %v1332
        %1337 = vst [vmem:[#allocation2 + $0x8] sm:$0xff] %v1333
        %1338 = vst [vmem:[#allocation2 + $0x10] sm:$0xff] %v1334
        %1339 = vst [vmem:[#allocation2 + $0x18] sm:$0xff] %v1335
        %p1340 = scmp.eq.s32.totalorder %s29, 1
        // Predicated region
        $region61: #{tpu_custom_call.1} parent=39 // pred_check
          %p1341 = pneg %p1340
        $region62: #{tpu_custom_call.1} parent=39 // pred_check_branch
          %1343 = sbr.rel (%p1341) target = $region64
        $region63: #{tpu_custom_call.1} parent=39 // pred_region
          %v1344 = vld [vmem:[#allocation2] sm:$0xff]
          %v1345 = vld [vmem:[#allocation2 + $0x8] sm:$0xff]
          %v1346 = vld [vmem:[#allocation2 + $0x10] sm:$0xff]
          %v1347 = vld [vmem:[#allocation2 + $0x18] sm:$0xff]
          %v1348 = vld [vmem:[#allocation8] sm:$0xf]
          %v1350 = vperm.slane %v1348, 0
          %v1351 = vperm.slane %v1348, 1
          %v1352 = vperm.slane %v1348, 2
          %v1353 = vperm.slane %v1348, 3
          %v1358 = vadd.f32 %v1344, %v1350
          %v1359 = vadd.f32 %v1345, %v1351
          %v1360 = vadd.f32 %v1346, %v1352
          %v1361 = vadd.f32 %v1347, %v1353
          %v1362 = vmul.f32 %v1358, %v1358
          %v1363 = vmul.f32 %v1359, %v1359
          %v1364 = vmul.f32 %v1360, %v1360
          %v1365 = vmul.f32 %v1361, %v1361
          %v1366 = vadd.f32 %v1362, %v1363
          %v1367 = vadd.f32 %v1366, %v1364
          %v1368 = vadd.f32 %v1367, %v1365
          %1369 = vadd.xlane.f32.xlu0 %v1368
          %v1370 = vpop.xlane.xlu0 %1369
          %v1371 = vrsqrt.pop %v1370
          %v1372 = vmul.f32 %v1371, %v1370
          %v1373 = vmul.f32 %v1372, %v1371
          %v1374 = vmul.f32 0.5, %v1373
          %v1375 = vsub.f32 1.5, %v1374
          %v1376 = vmul.f32 %v1371, %v1375
          %v1377 = vmul.f32 %v1370, %v1376
          %vm1378 = vcmp.eq.f32.partialorder %v1370, inf
          %v1379 = vsel %vm1378, %v1370, %v1377
          %vm1380 = vcmp.eq.f32.partialorder %v1370, 0.0
          %v1381 = vand.u32 %v1370, 2147483648
          %v1382 = vsel %vm1380, %v1381, %v1379
          %v1383 = vmax.f32 %v1382, 1e-12
          %v1384 = vrcp.pop %v1383
          %v1385 = vmul.f32 %v1383, %v1384
          %v1386 = vsub.f32 1.0, %v1385
          %v1387 = vmul.f32 %v1384, %v1386
          %v1388 = vadd.f32 %v1384, %v1387
          %vm1389 = vweird.f32 %v1383
          %vm1390 = vweird.f32 %v1384
          %vm1391 = vmor %vm1389, %vm1390
          %v1392 = vsel %vm1391, %v1384, %v1388
          %v1393 = vand.u32 2147483647, %v1383
          %vm1394 = vcmp.eq.f32.partialorder %v1393, 8.507059e+37
          %v1395 = vand.u32 %v1383, 2147483648
          %v1396 = vor.u32 1.1754944e-38, %v1395
          %v1397 = vsel %vm1394, %v1396, %v1392
          %v1398 = vmul.f32 %v1358, %v1397
          %v1399 = vmul.f32 %v1359, %v1397
          %v1400 = vmul.f32 %v1360, %v1397
          %v1401 = vmul.f32 %v1361, %v1397
          %v1402 = vld [vmem:[#allocation9] sm:$0xff]
          %v1403 = vld [vmem:[#allocation9 + $0x8] sm:$0xff]
          %v1404 = vld [vmem:[#allocation9 + $0x10] sm:$0xff]
          %v1405 = vld [vmem:[#allocation9 + $0x18] sm:$0xff]
          %v1406 = vld [vmem:[#allocation9 + $0x20] sm:$0xff]
          %v1407 = vld [vmem:[#allocation9 + $0x28] sm:$0xff]
          %v1408 = vld [vmem:[#allocation9 + $0x30] sm:$0xff]
          %v1409 = vld [vmem:[#allocation9 + $0x38] sm:$0xff]
          %v1410 = vld [vmem:[#allocation9 + $0x40] sm:$0xff]
          %v1411 = vld [vmem:[#allocation9 + $0x48] sm:$0xff]
          %v1412 = vld [vmem:[#allocation9 + $0x50] sm:$0xff]
          %v1413 = vld [vmem:[#allocation9 + $0x58] sm:$0xff]
          %v1414 = vld [vmem:[#allocation9 + $0x60] sm:$0xff]
          %v1415 = vld [vmem:[#allocation9 + $0x68] sm:$0xff]
          %v1416 = vld [vmem:[#allocation9 + $0x70] sm:$0xff]
          %v1417 = vld [vmem:[#allocation9 + $0x78] sm:$0xff]
          %v1418 = vld [vmem:[#allocation9 + $0x80] sm:$0xff]
          %v1419 = vld [vmem:[#allocation9 + $0x88] sm:$0xff]
          %v1420 = vld [vmem:[#allocation9 + $0x90] sm:$0xff]
          %v1421 = vld [vmem:[#allocation9 + $0x98] sm:$0xff]
          %v1422 = vld [vmem:[#allocation9 + $0xa0] sm:$0xff]
          %v1423 = vld [vmem:[#allocation9 + $0xa8] sm:$0xff]
          %v1424 = vld [vmem:[#allocation9 + $0xb0] sm:$0xff]
          %v1425 = vld [vmem:[#allocation9 + $0xb8] sm:$0xff]
          %v1426 = vld [vmem:[#allocation9 + $0xc0] sm:$0xff]
          %v1427 = vld [vmem:[#allocation9 + $0xc8] sm:$0xff]
          %v1428 = vld [vmem:[#allocation9 + $0xd0] sm:$0xff]
          %v1429 = vld [vmem:[#allocation9 + $0xd8] sm:$0xff]
          %v1430 = vld [vmem:[#allocation9 + $0xe0] sm:$0xff]
          %v1431 = vld [vmem:[#allocation9 + $0xe8] sm:$0xff]
          %v1432 = vld [vmem:[#allocation9 + $0xf0] sm:$0xff]
          %v1433 = vld [vmem:[#allocation9 + $0xf8] sm:$0xff]
          %v1434 = vld [vmem:[#allocation9 + $0x100] sm:$0xff]
          %v1435 = vld [vmem:[#allocation9 + $0x108] sm:$0xff]
          %v1436 = vld [vmem:[#allocation9 + $0x110] sm:$0xff]
          %v1437 = vld [vmem:[#allocation9 + $0x118] sm:$0xff]
          %v1438 = vld [vmem:[#allocation9 + $0x120] sm:$0xff]
          %v1439 = vld [vmem:[#allocation9 + $0x128] sm:$0xff]
          %v1440 = vld [vmem:[#allocation9 + $0x130] sm:$0xff]
          %v1441 = vld [vmem:[#allocation9 + $0x138] sm:$0xff]
          %v1442 = vld [vmem:[#allocation9 + $0x140] sm:$0xff]
          %v1443 = vld [vmem:[#allocation9 + $0x148] sm:$0xff]
          %v1444 = vld [vmem:[#allocation9 + $0x150] sm:$0xff]
          %v1445 = vld [vmem:[#allocation9 + $0x158] sm:$0xff]
          %v1446 = vld [vmem:[#allocation9 + $0x160] sm:$0xff]
          %v1447 = vld [vmem:[#allocation9 + $0x168] sm:$0xff]
          %v1448 = vld [vmem:[#allocation9 + $0x170] sm:$0xff]
          %v1449 = vld [vmem:[#allocation9 + $0x178] sm:$0xff]
          %v1450 = vld [vmem:[#allocation9 + $0x180] sm:$0xff]
          %v1451 = vld [vmem:[#allocation9 + $0x188] sm:$0xff]
          %v1452 = vld [vmem:[#allocation9 + $0x190] sm:$0xff]
          %v1453 = vld [vmem:[#allocation9 + $0x198] sm:$0xff]
          %v1454 = vld [vmem:[#allocation9 + $0x1a0] sm:$0xff]
          %v1455 = vld [vmem:[#allocation9 + $0x1a8] sm:$0xff]
          %v1456 = vld [vmem:[#allocation9 + $0x1b0] sm:$0xff]
          %v1457 = vld [vmem:[#allocation9 + $0x1b8] sm:$0xff]
          %v1458 = vld [vmem:[#allocation9 + $0x1c0] sm:$0xff]
          %v1459 = vld [vmem:[#allocation9 + $0x1c8] sm:$0xff]
          %v1460 = vld [vmem:[#allocation9 + $0x1d0] sm:$0xff]
          %v1461 = vld [vmem:[#allocation9 + $0x1d8] sm:$0xff]
          %v1462 = vld [vmem:[#allocation9 + $0x1e0] sm:$0xff]
          %v1463 = vld [vmem:[#allocation9 + $0x1e8] sm:$0xff]
          %v1464 = vld [vmem:[#allocation9 + $0x1f0] sm:$0xff]
          %v1465 = vld [vmem:[#allocation9 + $0x1f8] sm:$0xff]
          %1466 = vmatpush.xpose.msra.mxu0 %v1462
          %1467 = vmatpush.xpose.msra.mxu0 %v1458
          %1468 = vmatpush.xpose.msra.mxu0 %v1454
          %1469 = vmatpush.xpose.msra.mxu0 %v1450
          %1470 = vmatpush.xpose.msra.mxu0 %v1446
          %1471 = vmatpush.xpose.msra.mxu0 %v1442
          %1472 = vmatpush.xpose.msra.mxu0 %v1438
          %1473 = vmatpush.xpose.msra.mxu0 %v1434
          %1474 = vmatpush.xpose.msra.mxu0 %v1430
          %1475 = vmatpush.xpose.msra.mxu0 %v1426
          %1476 = vmatpush.xpose.msra.mxu0 %v1422
          %1477 = vmatpush.xpose.msra.mxu0 %v1418
          %1478 = vmatpush.xpose.msra.mxu0 %v1414
          %1479 = vmatpush.xpose.msra.mxu0 %v1410
          %1480 = vmatpush.xpose.msra.mxu0 %v1406
          %1481 = vmatpush.xpose.msra.mxu0 %v1402
          %1482 = vmatmul.f32.gmra.mxu0 %v1398
          %v1483 = vpop.f32.mrf.mxu0
          %v1484 = vadd.f32 0.0, %v1483
          %1485 = vdwg.mxu0
          %1486 = vmatpush.xpose.msra.mxu0 %v1463
          %1487 = vmatpush.xpose.msra.mxu0 %v1459
          %1488 = vmatpush.xpose.msra.mxu0 %v1455
          %1489 = vmatpush.xpose.msra.mxu0 %v1451
          %1490 = vmatpush.xpose.msra.mxu0 %v1447
          %1491 = vmatpush.xpose.msra.mxu0 %v1443
          %1492 = vmatpush.xpose.msra.mxu0 %v1439
          %1493 = vmatpush.xpose.msra.mxu0 %v1435
          %1494 = vmatpush.xpose.msra.mxu0 %v1431
          %1495 = vmatpush.xpose.msra.mxu0 %v1427
          %1496 = vmatpush.xpose.msra.mxu0 %v1423
          %1497 = vmatpush.xpose.msra.mxu0 %v1419
          %1498 = vmatpush.xpose.msra.mxu0 %v1415
          %1499 = vmatpush.xpose.msra.mxu0 %v1411
          %1500 = vmatpush.xpose.msra.mxu0 %v1407
          %1501 = vmatpush.xpose.msra.mxu0 %v1403
          %1502 = vmatmul.f32.gmra.mxu0 %v1399
          %v1503 = vpop.f32.mrf.mxu0
          %v1504 = vadd.f32 %v1484, %v1503
          %1505 = vdwg.mxu0
          %1506 = vmatpush.xpose.msra.mxu0 %v1464
          %1507 = vmatpush.xpose.msra.mxu0 %v1460
          %1508 = vmatpush.xpose.msra.mxu0 %v1456
          %1509 = vmatpush.xpose.msra.mxu0 %v1452
          %1510 = vmatpush.xpose.msra.mxu0 %v1448
          %1511 = vmatpush.xpose.msra.mxu0 %v1444
          %1512 = vmatpush.xpose.msra.mxu0 %v1440
          %1513 = vmatpush.xpose.msra.mxu0 %v1436
          %1514 = vmatpush.xpose.msra.mxu0 %v1432
          %1515 = vmatpush.xpose.msra.mxu0 %v1428
          %1516 = vmatpush.xpose.msra.mxu0 %v1424
          %1517 = vmatpush.xpose.msra.mxu0 %v1420
          %1518 = vmatpush.xpose.msra.mxu0 %v1416
          %1519 = vmatpush.xpose.msra.mxu0 %v1412
          %1520 = vmatpush.xpose.msra.mxu0 %v1408
          %1521 = vmatpush.xpose.msra.mxu0 %v1404
          %1522 = vmatmul.f32.gmra.mxu0 %v1400
          %v1523 = vpop.f32.mrf.mxu0
          %v1524 = vadd.f32 %v1504, %v1523
          %1525 = vdwg.mxu0
          %1526 = vmatpush.xpose.msra.mxu0 %v1465
          %1527 = vmatpush.xpose.msra.mxu0 %v1461
          %1528 = vmatpush.xpose.msra.mxu0 %v1457
          %1529 = vmatpush.xpose.msra.mxu0 %v1453
          %1530 = vmatpush.xpose.msra.mxu0 %v1449
          %1531 = vmatpush.xpose.msra.mxu0 %v1445
          %1532 = vmatpush.xpose.msra.mxu0 %v1441
          %1533 = vmatpush.xpose.msra.mxu0 %v1437
          %1534 = vmatpush.xpose.msra.mxu0 %v1433
          %1535 = vmatpush.xpose.msra.mxu0 %v1429
          %1536 = vmatpush.xpose.msra.mxu0 %v1425
          %1537 = vmatpush.xpose.msra.mxu0 %v1421
          %1538 = vmatpush.xpose.msra.mxu0 %v1417
          %1539 = vmatpush.xpose.msra.mxu0 %v1413
          %1540 = vmatpush.xpose.msra.mxu0 %v1409
          %1541 = vmatpush.xpose.msra.mxu0 %v1405
          %1542 = vmatmul.f32.gmra.mxu0 %v1401
          %v1543 = vpop.f32.mrf.mxu0
          %v1544 = vadd.f32 %v1524, %v1543
          %1545 = vdwg.mxu0
          %v1546 = vmul.f32 %v1544, 2.0
          %v1547 = vld [vmem:[%s4] sm:$0x1]
          %v1549 = vperm.slane %v1547, 0
          %v1551 = vsub.f32 %v1546, %v1549
          %v1552 = vsub.f32 %v1551, 1.0
          %1553 = vst [vmem:[#allocation11] sm:$0xff] %v1552
        $region64: #{tpu_custom_call.1} parent=39 // pred_fallthru
          _
        // Predicated region
        $region65: #{tpu_custom_call.1} parent=39 // pred_check
          %p1554 = pneg %p171
        $region66: #{tpu_custom_call.1} parent=39 // pred_check_branch
          %1556 = sbr.rel (%p1554) target = $region68
        $region67: #{tpu_custom_call.1} parent=39 // pred_region
          %1558 = vsyncadd [#allocation5], 0
          %s1559 = smul.addr %s28, 8
          %s1560 = scalar_lea.hbm %s5, %s1559
          %s1562 = sshll.u32 [#allocation11], 4
          %s1563 = int_to_ptr.vmem [resolvable:$true] %s1562
          %s1564 = sshll.u32 %s1560, 4
          %s1565 = int_to_ptr.hbm [resolvable:$true] %s1564
          %1567 = dma.vmem_to_hbm [thread:$0]  %s1563, 128, %s1565, [#allocation5]
        $region68: #{tpu_custom_call.1} parent=39 // pred_fallthru
          _
        // Predicated region
        $region69: #{tpu_custom_call.1} parent=39 // pred_check
          %p1568 = pneg %p171
        $region70: #{tpu_custom_call.1} parent=39 // pred_check_branch
          %1570 = sbr.rel (%p1568) target = $region72
        $region71: #{tpu_custom_call.1} parent=39 // pred_region
          %1572 = dma.done [#allocation5], 128
        $region72: #{tpu_custom_call.1} parent=39 // pred_fallthru
          _
      $region40: #{tpu_custom_call.1} parent=5 // pred_fallthru
        _
      %p1573 = scmp.le.s32.totalorder 2, %s19
      // Predicated region
      $region73: #{tpu_custom_call.1} parent=5 // pred_check
        %p1574 = pneg %p1573
      $region74: #{tpu_custom_call.1} parent=5 // pred_check_branch
        %1576 = sbr.rel (%p1574) target = $region76
      $region75: #{tpu_custom_call.1} parent=5 // pred_region
        %s1577 = ssub.s32 %s19, 2
      $region76: #{tpu_custom_call.1} parent=5 // pred_fallthru
        _
    $region6: #{tpu_custom_call.1} parent=1 // loop_footer
      %s23 = sadd.s32 1, %s19
    $region7: #{tpu_custom_call.1} parent=1 // loop_footer_branch
      %18 = sbr.rel target = $region3
    $region8: #{tpu_custom_call.1} parent=1 // loop_exit
      _
    %1578 = vsyncpa [#allocation4], 1
    %s1579 = scalar_lea.sflag [#allocation4], 1
    %1580 = vsyncpa %s1579, 1
    %1581 = vsyncpa [#allocation7], 1
    %s1582 = scalar_lea.sflag [#allocation7], 1
    %1583 = vsyncpa %s1582, 1
    %1584 = vsyncpa [#allocation10], 1
    %1585 = vsyncpa [#allocation5], 1
    %s1586 = scalar_lea.sflag [#allocation5], 1
    %1587 = vsyncpa %s1586, 1

</llo_original>
